<compile_context>
chip_gen: v5e
topology: v5e:2x2
jax: 0.10.0
libtpu: 0.0.40
codegen_flags: <defaults>
</compile_context>

<pallas_src>
import functools
import math

import jax
import jax.numpy as jnp
from jax.experimental import pallas as pl
from jax.experimental.pallas import tpu as pltpu

# ---- small DistilBERT-like config (architecture identical, sizes reduced) ----
VOCAB = 100
MAX_POS = 16
HIDDEN = 64          # stands in for 768
N_HEADS = 4          # stands in for 12
HEAD_DIM = HIDDEN // N_HEADS
FFN = 128            # stands in for 3072
N_LAYERS = 2         # stands in for 6
N_CLASSES = 3
CLS_PAD = 128        # classifier output padded to a full 128-lane row
LN_EPS = 1e-12
MASK_BIAS = -1e9     # finite additive bias (finfo.min would overflow on add)


# --------------------------- fused whole-model kernel --------------------------
def _model_kernel(x0_ref, mask_ref, eg_ref, eb_ref,
                  wqkv_ref, bqkv_ref, wo_ref, bo_ref, ln1g_ref, ln1b_ref,
                  w1_ref, b1_ref, w2_ref, b2_ref, ln2g_ref, ln2b_ref,
                  prew_ref, preb_ref, clsw_ref, clsb_ref,
                  out_ref, x_res, *, batch, seq):
    layer = pl.program_id(0)
    tokens = batch * seq

    def layer_norm(x, g, b):                      # f32 elementwise
        mean = jnp.mean(x, axis=-1, keepdims=True)
        xc = x - mean
        var = jnp.mean(xc * xc, axis=-1, keepdims=True)
        return xc * jax.lax.rsqrt(var + LN_EPS) * g + b

    def gelu(x):                                  # f32 elementwise
        # TODO(synk): tanh-approximate GELU; HF DistilBERT uses erf GELU (~1e-3 diff).
        c = math.sqrt(2.0 / math.pi)
        return 0.5 * x * (1.0 + jnp.tanh(c * (x + 0.044715 * x * x * x)))

    def mm(a_f32, w_ref, bias=None):
        # bf16 MXU path with f32 accumulation; elementwise stays f32 (v5e-safe).
        out = jnp.dot(a_f32.astype(jnp.bfloat16), w_ref[...],
                      preferred_element_type=jnp.float32)
        return out if bias is None else out + bias

    @pl.when(layer == 0)
    def _():
        # embedding LayerNorm initializes the residual-stream VMEM scratch
        x_res[...] = layer_norm(x0_ref[...], eg_ref[...], eb_ref[...])
        out_ref[...] = jnp.zeros_like(out_ref)

    x = x_res[...]                                # (T, H) f32, T = batch*seq

    # ------------------- multi-head self-attention (batched heads) -------------
    # fused Q|K|V projection; the 1/sqrt(HEAD_DIM) query scale is folded into
    # the Q columns of wqkv at init, so no in-kernel scale multiply.
    qkv = mm(x, wqkv_ref, bqkv_ref[...])          # (T, 3H) f32

    def split_heads(off):                         # (T, H) slab -> (NH*B, S, HD) bf16
        return jnp.concatenate(
            [qkv[:, off + h * HEAD_DIM: off + (h + 1) * HEAD_DIM]
                 .reshape(batch, seq, HEAD_DIM) for h in range(N_HEADS)],
            axis=0).astype(jnp.bfloat16)

    q = split_heads(0)
    k = split_heads(HIDDEN)
    v = split_heads(2 * HIDDEN)

    # one batched QK^T over all heads (heads folded into the batch dim)
    s = jnp.einsum("gqd,gkd->gqk", q, k,
                   preferred_element_type=jnp.float32)        # (NH*B, S, S) f32
    # additive mask bias, computed once per layer (not per head)
    bias = jnp.where(mask_ref[...] == 0.0, MASK_BIAS, 0.0)    # (B, 1, S)
    s = s.reshape(N_HEADS, batch, seq, seq) + bias[None]
    p = jax.nn.softmax(s, axis=-1)                            # f32 softmax
    p = p.reshape(N_HEADS * batch, seq, seq).astype(jnp.bfloat16)  # bf16 for PV matmul
    ctx = jnp.einsum("gqk,gkd->gqd", p, v,
                     preferred_element_type=jnp.float32)      # (NH*B, S, HD)

    # output projection: one batched (NH,T,HD)@(NH,HD,H) matmul + head-sum
    # (wo stored as (NH, HD, H) per layer at init)
    ctx = ctx.reshape(N_HEADS, tokens, HEAD_DIM).astype(jnp.bfloat16)
    attn = jnp.einsum("htd,hdo->hto", ctx, wo_ref[...],
                      preferred_element_type=jnp.float32)     # (NH, T, H)
    attn = jnp.sum(attn, axis=0) + bo_ref[...]                # (T, H)
    x = layer_norm(attn + x, ln1g_ref[...], ln1b_ref[...])    # sa_layer_norm

    # ------------------- FFN ---------------------------------------------------
    hid = gelu(mm(x, w1_ref, b1_ref[...]))
    ffn = mm(hid, w2_ref, b2_ref[...])
    x = layer_norm(ffn + x, ln2g_ref[...], ln2b_ref[...])     # output_layer_norm
    x_res[...] = x

    # ------------------- classification head (last layer only) ----------------
    @pl.when(layer == N_LAYERS - 1)
    def _():
        pooled = x.reshape(batch, seq, HIDDEN)[:, 0, :]       # CLS token, (B, H)
        pooled = jnp.maximum(mm(pooled, prew_ref, preb_ref[...]), 0.0)
        # TODO(synk): dropout(0.3) (and emb/attn dropouts) are inference-mode identity.
        out_ref[...] = mm(pooled, clsw_ref, clsb_ref[...])    # (B, CLS_PAD)


# -------------------------- parameters (deterministic) ------------------------
def init_params(key):
    keys = iter(jax.random.split(key, 64))

    def w(shape):
        return 0.02 * jax.random.normal(next(keys), shape, jnp.float32)

    def stack(shape):
        return jnp.stack([w(shape) for _ in range(N_LAYERS)])

    bf16 = jnp.bfloat16
    scale = 1.0 / math.sqrt(HEAD_DIM)

    # fused Wq|Wk|Wv with the query scale folded into the Q columns
    wq = stack((HIDDEN, HIDDEN)) * scale
    wk = stack((HIDDEN, HIDDEN))
    wv = stack((HIDDEN, HIDDEN))
    wqkv = jnp.concatenate([wq, wk, wv], axis=-1)             # (L, H, 3H)
    # Wo stored per head: (L, NH, HD, H) so the output projection is one batched einsum
    wo = stack((HIDDEN, HIDDEN)).reshape(N_LAYERS, N_HEADS, HEAD_DIM, HIDDEN)

    # lane-padded classifier built ONCE at init (3 -> 128 output lanes)
    cls_w = jnp.zeros((HIDDEN, CLS_PAD), jnp.float32).at[:, :N_CLASSES].set(
        w((HIDDEN, N_CLASSES)))
    cls_b = jnp.zeros((1, CLS_PAD), jnp.float32)

    return {
        "word_emb": w((VOCAB, HIDDEN)),
        "pos_emb": w((MAX_POS, HIDDEN)),
        "emb_ln_g": jnp.ones((1, HIDDEN), jnp.float32),
        "emb_ln_b": jnp.zeros((1, HIDDEN), jnp.float32),
        # matmul weights in bf16 (MXU-native path); biases / LN params stay f32
        "wqkv": wqkv.astype(bf16),
        # (q-bias columns would also carry the folded scale; they are zero here)
        "bqkv": jnp.zeros((N_LAYERS, 1, 3 * HIDDEN), jnp.float32),
        "wo": wo.astype(bf16),
        "bo": jnp.zeros((N_LAYERS, 1, HIDDEN), jnp.float32),
        "ln1_g": jnp.ones((N_LAYERS, 1, HIDDEN), jnp.float32),
        "ln1_b": jnp.zeros((N_LAYERS, 1, HIDDEN), jnp.float32),
        "w1": stack((HIDDEN, FFN)).astype(bf16),
        "b1": jnp.zeros((N_LAYERS, 1, FFN), jnp.float32),
        "w2": stack((FFN, HIDDEN)).astype(bf16),
        "b2": jnp.zeros((N_LAYERS, 1, HIDDEN), jnp.float32),
        "ln2_g": jnp.ones((N_LAYERS, 1, HIDDEN), jnp.float32),
        "ln2_b": jnp.zeros((N_LAYERS, 1, HIDDEN), jnp.float32),
        "pre_w": w((HIDDEN, HIDDEN)).astype(bf16),            # pre_classifier
        "pre_b": jnp.zeros((1, HIDDEN), jnp.float32),
        "cls_w": cls_w.astype(bf16),                          # classifier (-> 3, padded)
        "cls_b": cls_b,
    }


# ---------------------------------- forward -----------------------------------
def distilbert_class_forward(params, input_ids, attention_mask):
    b, s = input_ids.shape
    tokens = b * s
    # embedding gather + positional add are plain-JAX glue
    tok = jnp.take(params["word_emb"], input_ids, axis=0)     # (B, S, H)
    pos = params["pos_emb"][:s][None, :, :]                   # (1, S, H)
    x0 = (tok + pos).reshape(tokens, HIDDEN)
    mask = attention_mask.astype(jnp.float32).reshape(b, 1, s)

    inputs = (
        x0, mask,
        params["emb_ln_g"], params["emb_ln_b"],
        params["wqkv"], params["bqkv"], params["wo"], params["bo"],
        params["ln1_g"], params["ln1_b"],
        params["w1"], params["b1"], params["w2"], params["b2"],
        params["ln2_g"], params["ln2_b"],
        params["pre_w"], params["pre_b"], params["cls_w"], params["cls_b"],
    )

    def resident(shape):          # same block for every layer step (stays in VMEM)
        return pl.BlockSpec(shape, lambda l, _z=(0,) * len(shape): _z)

    def per_layer(shape):         # streamed + double-buffered along the layer grid
        return pl.BlockSpec((None,) + shape,
                            lambda l, _n=len(shape): (l,) + (0,) * _n)

    grid_spec = pltpu.PrefetchScalarGridSpec(
        num_scalar_prefetch=0,
        grid=(N_LAYERS,),
        in_specs=[
            resident((tokens, HIDDEN)),                 # x0 (embeddings)
            resident((b, 1, s)),                        # attention mask
            resident((1, HIDDEN)), resident((1, HIDDEN)),          # emb LN
            per_layer((HIDDEN, 3 * HIDDEN)),            # wqkv
            per_layer((1, 3 * HIDDEN)),                 # bqkv
            per_layer((N_HEADS, HEAD_DIM, HIDDEN)),     # wo (per-head)
            per_layer((1, HIDDEN)),                     # bo
            per_layer((1, HIDDEN)), per_layer((1, HIDDEN)),         # sa LN
            per_layer((HIDDEN, FFN)), per_layer((1, FFN)),          # FFN in
            per_layer((FFN, HIDDEN)), per_layer((1, HIDDEN)),       # FFN out
            per_layer((1, HIDDEN)), per_layer((1, HIDDEN)),         # out LN
            resident((HIDDEN, HIDDEN)), resident((1, HIDDEN)),      # pre_classifier
            resident((HIDDEN, CLS_PAD)), resident((1, CLS_PAD)),    # classifier
        ],
        out_specs=pl.BlockSpec((b, CLS_PAD), lambda l: (0, 0)),
        scratch_shapes=[pltpu.VMEM((tokens, HIDDEN), jnp.float32)],  # residual stream
    )

    # TODO(synk): at real DistilBERT sizes add an outer batch-tile grid axis
    # marked "parallel" (v7x dual-TC); tokens cannot be tiled finer than a full
    # sequence because attention needs the whole sequence.
    out = pl.pallas_call(
        functools.partial(_model_kernel, batch=b, seq=s),
        out_shape=jax.ShapeDtypeStruct((b, CLS_PAD), jnp.float32),
        grid_spec=grid_spec,
        compiler_params=pltpu.CompilerParams(
            dimension_semantics=("arbitrary",),         # layer axis carries state
            vmem_limit_bytes=32 * 1024 * 1024),
    )(*inputs)
    return out[:, :N_CLASSES]


if __name__ == "__main__":
    key = jax.random.PRNGKey(0)
    pkey, ikey = jax.random.split(key)
    params = init_params(pkey)

    B, S = 2, 8
    input_ids = jax.random.randint(ikey, (B, S), 0, VOCAB, dtype=jnp.int32)
    attention_mask = jnp.ones((B, S), dtype=jnp.int32).at[1, 6:].set(0)  # pad tail of row 1

    logits = jax.jit(distilbert_class_forward)(params, input_ids, attention_mask)
    jax.block_until_ready(logits)
    assert logits.shape == (B, N_CLASSES) and logits.dtype == jnp.float32
    print("KERNEL_OK")
</pallas_src>

<mosaic_0001>
module attributes {stable_mosaic.version = 11 : i64} {
  func.func @_model_kernel(%arg0: i32, %arg1: memref<16x64xf32, #tpu.memory_space<vmem>>, %arg2: memref<2x1x8xf32, #tpu.memory_space<vmem>>, %arg3: memref<1x64xf32, #tpu.memory_space<vmem>>, %arg4: memref<1x64xf32, #tpu.memory_space<vmem>>, %arg5: memref<1x64x192xbf16, #tpu.memory_space<vmem>>, %arg6: memref<1x1x192xf32, #tpu.memory_space<vmem>>, %arg7: memref<1x4x16x64xbf16, #tpu.memory_space<vmem>>, %arg8: memref<1x1x64xf32, #tpu.memory_space<vmem>>, %arg9: memref<1x1x64xf32, #tpu.memory_space<vmem>>, %arg10: memref<1x1x64xf32, #tpu.memory_space<vmem>>, %arg11: memref<1x64x128xbf16, #tpu.memory_space<vmem>>, %arg12: memref<1x1x128xf32, #tpu.memory_space<vmem>>, %arg13: memref<1x128x64xbf16, #tpu.memory_space<vmem>>, %arg14: memref<1x1x64xf32, #tpu.memory_space<vmem>>, %arg15: memref<1x1x64xf32, #tpu.memory_space<vmem>>, %arg16: memref<1x1x64xf32, #tpu.memory_space<vmem>>, %arg17: memref<64x64xbf16, #tpu.memory_space<vmem>>, %arg18: memref<1x64xf32, #tpu.memory_space<vmem>>, %arg19: memref<64x128xbf16, #tpu.memory_space<vmem>>, %arg20: memref<1x128xf32, #tpu.memory_space<vmem>>, %arg21: memref<2x128xf32, #tpu.memory_space<vmem>>, %arg22: memref<16x64xf32, #tpu.memory_space<vmem>>) attributes {dimension_semantics = [#tpu.dimension_semantics<arbitrary>], iteration_bounds = array<i64: 2>, scalar_prefetch = 0 : i64, scratch_operands = 1 : i64, tpu.core_type = #tpu.core_type<tc>, window_params = [{pipeline_mode = #tpu.pipeline_mode<synchronous>, transform_indices = @transform_0, window_bounds = array<i64: 16, 64>}, {pipeline_mode = #tpu.pipeline_mode<synchronous>, transform_indices = @transform_1, window_bounds = array<i64: 2, 1, 8>}, {pipeline_mode = #tpu.pipeline_mode<synchronous>, transform_indices = @transform_2, window_bounds = array<i64: 1, 64>}, {pipeline_mode = #tpu.pipeline_mode<synchronous>, transform_indices = @transform_3, window_bounds = array<i64: 1, 64>}, {transform_indices = @transform_4, window_bounds = array<i64: 1, 64, 192>}, {transform_indices = @transform_5, window_bounds = array<i64: 1, 1, 192>}, {transform_indices = @transform_6, window_bounds = array<i64: 1, 4, 16, 64>}, {transform_indices = @transform_7, window_bounds = array<i64: 1, 1, 64>}, {transform_indices = @transform_8, window_bounds = array<i64: 1, 1, 64>}, {transform_indices = @transform_9, window_bounds = array<i64: 1, 1, 64>}, {transform_indices = @transform_10, window_bounds = array<i64: 1, 64, 128>}, {transform_indices = @transform_11, window_bounds = array<i64: 1, 1, 128>}, {transform_indices = @transform_12, window_bounds = array<i64: 1, 128, 64>}, {transform_indices = @transform_13, window_bounds = array<i64: 1, 1, 64>}, {transform_indices = @transform_14, window_bounds = array<i64: 1, 1, 64>}, {transform_indices = @transform_15, window_bounds = array<i64: 1, 1, 64>}, {pipeline_mode = #tpu.pipeline_mode<synchronous>, transform_indices = @transform_16, window_bounds = array<i64: 64, 64>}, {pipeline_mode = #tpu.pipeline_mode<synchronous>, transform_indices = @transform_17, window_bounds = array<i64: 1, 64>}, {pipeline_mode = #tpu.pipeline_mode<synchronous>, transform_indices = @transform_18, window_bounds = array<i64: 64, 128>}, {pipeline_mode = #tpu.pipeline_mode<synchronous>, transform_indices = @transform_19, window_bounds = array<i64: 1, 128>}, {pipeline_mode = #tpu.pipeline_mode<synchronous>, transform_indices = @transform_20, window_bounds = array<i64: 2, 128>}]} {
    %c0_i32 = arith.constant 0 : i32
    %0 = arith.cmpi eq, %arg0, %c0_i32 : i32
    %1 = arith.extui %0 : i1 to i32
    %c0_i32_0 = arith.constant 0 : i32
    %2 = arith.cmpi ne, %1, %c0_i32_0 : i32
    scf.if %2 {
      %c0_71 = arith.constant 0 : index
      %c0_72 = arith.constant 0 : index
      %160 = vector.load %arg1[%c0_71, %c0_72] : memref<16x64xf32, #tpu.memory_space<vmem>>, vector<16x64xf32>
      %c0_73 = arith.constant 0 : index
      %c0_74 = arith.constant 0 : index
      %161 = vector.load %arg3[%c0_73, %c0_74] : memref<1x64xf32, #tpu.memory_space<vmem>>, vector<1x64xf32>
      %c0_75 = arith.constant 0 : index
      %c0_76 = arith.constant 0 : index
      %162 = vector.load %arg4[%c0_75, %c0_76] : memref<1x64xf32, #tpu.memory_space<vmem>>, vector<1x64xf32>
      %cst_77 = arith.constant dense<0.000000e+00> : vector<16xf32>
      %163 = vector.multi_reduction <add>, %160, %cst_77 [1] : vector<16x64xf32> to vector<16xf32>
      %164 = vector.shape_cast %163 : vector<16xf32> to vector<16x1xf32>
      %cst_78 = arith.constant 6.400000e+01 : f32
      %165 = vector.broadcast %cst_78 : f32 to vector<16x1xf32>
      %166 = arith.divf %164, %165 : vector<16x1xf32>
      %167 = vector.broadcast %166 : vector<16x1xf32> to vector<16x64xf32>
      %168 = arith.subf %160, %167 : vector<16x64xf32>
      %169 = arith.mulf %168, %168 : vector<16x64xf32>
      %cst_79 = arith.constant dense<0.000000e+00> : vector<16xf32>
      %170 = vector.multi_reduction <add>, %169, %cst_79 [1] : vector<16x64xf32> to vector<16xf32>
      %171 = vector.shape_cast %170 : vector<16xf32> to vector<16x1xf32>
      %cst_80 = arith.constant 6.400000e+01 : f32
      %172 = vector.broadcast %cst_80 : f32 to vector<16x1xf32>
      %173 = arith.divf %171, %172 : vector<16x1xf32>
      %cst_81 = arith.constant 9.99999996E-13 : f32
      %174 = vector.broadcast %cst_81 : f32 to vector<16x1xf32>
      %175 = arith.addf %173, %174 : vector<16x1xf32>
      %176 = math.rsqrt %175 : vector<16x1xf32>
      %177 = vector.broadcast %176 : vector<16x1xf32> to vector<16x64xf32>
      %178 = arith.mulf %168, %177 : vector<16x64xf32>
      %179 = vector.broadcast %161 : vector<1x64xf32> to vector<16x64xf32>
      %180 = arith.mulf %178, %179 : vector<16x64xf32>
      %181 = vector.broadcast %162 : vector<1x64xf32> to vector<16x64xf32>
      %182 = arith.addf %180, %181 : vector<16x64xf32>
      %c0_82 = arith.constant 0 : index
      %c0_83 = arith.constant 0 : index
      %183 = vector.load %arg22[%c0_82, %c0_83] : memref<16x64xf32, #tpu.memory_space<vmem>>, vector<16x64xf32>
      tpu.vector_store %arg22[%c0_82, %c0_83], %182 {strides = array<i32>} : memref<16x64xf32, #tpu.memory_space<vmem>>, vector<16x64xf32>,
      %cst_84 = arith.constant 0.000000e+00 : f32
      %184 = vector.broadcast %cst_84 : f32 to vector<2x128xf32>
      %c0_85 = arith.constant 0 : index
      %c0_86 = arith.constant 0 : index
      %185 = vector.load %arg21[%c0_85, %c0_86] : memref<2x128xf32, #tpu.memory_space<vmem>>, vector<2x128xf32>
      tpu.vector_store %arg21[%c0_85, %c0_86], %184 {strides = array<i32>} : memref<2x128xf32, #tpu.memory_space<vmem>>, vector<2x128xf32>,
    } else {
    }
    %c0 = arith.constant 0 : index
    %c0_1 = arith.constant 0 : index
    %3 = vector.load %arg22[%c0, %c0_1] : memref<16x64xf32, #tpu.memory_space<vmem>>, vector<16x64xf32>
    %c0_2 = arith.constant 0 : index
    %c0_3 = arith.constant 0 : index
    %c0_4 = arith.constant 0 : index
    %4 = vector.load %arg6[%c0_2, %c0_3, %c0_4] : memref<1x1x192xf32, #tpu.memory_space<vmem>>, vector<1x1x192xf32>
    %5 = vector.shape_cast %4 : vector<1x1x192xf32> to vector<1x192xf32>
    %6 = arith.truncf %3 : vector<16x64xf32> to vector<16x64xbf16>
    %c0_5 = arith.constant 0 : index
    %c0_6 = arith.constant 0 : index
    %c0_7 = arith.constant 0 : index
    %7 = vector.load %arg5[%c0_5, %c0_6, %c0_7] : memref<1x64x192xbf16, #tpu.memory_space<vmem>>, vector<1x64x192xbf16>
    %8 = vector.shape_cast %7 : vector<1x64x192xbf16> to vector<64x192xbf16>
    %cst = arith.constant dense<0.000000e+00> : vector<16x192xf32>
    %9 = tpu.matmul %6, %8, %cst {dimension_numbers = #tpu.dot_dimension_numbers<[1], [0], [0], [1], [0, 0, 1, 1], [], []>} : vector<16x64xbf16>, vector<64x192xbf16>, vector<16x192xf32> -> vector<16x192xf32>
    %10 = vector.broadcast %5 : vector<1x192xf32> to vector<16x192xf32>
    %11 = arith.addf %9, %10 : vector<16x192xf32>
    %12 = vector.extract_strided_slice %11 {offsets = [0, 0], sizes = [16, 16], strides = [1, 1]} : vector<16x192xf32> to vector<16x16xf32>
    %13 = vector.shape_cast %12 : vector<16x16xf32> to vector<2x8x16xf32>
    %14 = vector.extract_strided_slice %11 {offsets = [0, 16], sizes = [16, 16], strides = [1, 1]} : vector<16x192xf32> to vector<16x16xf32>
    %15 = vector.shape_cast %14 : vector<16x16xf32> to vector<2x8x16xf32>
    %16 = vector.extract_strided_slice %11 {offsets = [0, 32], sizes = [16, 16], strides = [1, 1]} : vector<16x192xf32> to vector<16x16xf32>
    %17 = vector.shape_cast %16 : vector<16x16xf32> to vector<2x8x16xf32>
    %18 = vector.extract_strided_slice %11 {offsets = [0, 48], sizes = [16, 16], strides = [1, 1]} : vector<16x192xf32> to vector<16x16xf32>
    %19 = vector.shape_cast %18 : vector<16x16xf32> to vector<2x8x16xf32>
    %20 = tpu.concatenate %13, %15, %17, %19 in 0 : vector<2x8x16xf32>, vector<2x8x16xf32>, vector<2x8x16xf32>, vector<2x8x16xf32> -> vector<8x8x16xf32>
    %21 = arith.truncf %20 : vector<8x8x16xf32> to vector<8x8x16xbf16>
    %22 = vector.extract_strided_slice %11 {offsets = [0, 64], sizes = [16, 16], strides = [1, 1]} : vector<16x192xf32> to vector<16x16xf32>
    %23 = vector.shape_cast %22 : vector<16x16xf32> to vector<2x8x16xf32>
    %24 = vector.extract_strided_slice %11 {offsets = [0, 80], sizes = [16, 16], strides = [1, 1]} : vector<16x192xf32> to vector<16x16xf32>
    %25 = vector.shape_cast %24 : vector<16x16xf32> to vector<2x8x16xf32>
    %26 = vector.extract_strided_slice %11 {offsets = [0, 96], sizes = [16, 16], strides = [1, 1]} : vector<16x192xf32> to vector<16x16xf32>
    %27 = vector.shape_cast %26 : vector<16x16xf32> to vector<2x8x16xf32>
    %28 = vector.extract_strided_slice %11 {offsets = [0, 112], sizes = [16, 16], strides = [1, 1]} : vector<16x192xf32> to vector<16x16xf32>
    %29 = vector.shape_cast %28 : vector<16x16xf32> to vector<2x8x16xf32>
    %30 = tpu.concatenate %23, %25, %27, %29 in 0 : vector<2x8x16xf32>, vector<2x8x16xf32>, vector<2x8x16xf32>, vector<2x8x16xf32> -> vector<8x8x16xf32>
    %31 = arith.truncf %30 : vector<8x8x16xf32> to vector<8x8x16xbf16>
    %32 = vector.extract_strided_slice %11 {offsets = [0, 128], sizes = [16, 16], strides = [1, 1]} : vector<16x192xf32> to vector<16x16xf32>
    %33 = vector.shape_cast %32 : vector<16x16xf32> to vector<2x8x16xf32>
    %34 = vector.extract_strided_slice %11 {offsets = [0, 144], sizes = [16, 16], strides = [1, 1]} : vector<16x192xf32> to vector<16x16xf32>
    %35 = vector.shape_cast %34 : vector<16x16xf32> to vector<2x8x16xf32>
    %36 = vector.extract_strided_slice %11 {offsets = [0, 160], sizes = [16, 16], strides = [1, 1]} : vector<16x192xf32> to vector<16x16xf32>
    %37 = vector.shape_cast %36 : vector<16x16xf32> to vector<2x8x16xf32>
    %38 = vector.extract_strided_slice %11 {offsets = [0, 176], sizes = [16, 16], strides = [1, 1]} : vector<16x192xf32> to vector<16x16xf32>
    %39 = vector.shape_cast %38 : vector<16x16xf32> to vector<2x8x16xf32>
    %40 = tpu.concatenate %33, %35, %37, %39 in 0 : vector<2x8x16xf32>, vector<2x8x16xf32>, vector<2x8x16xf32>, vector<2x8x16xf32> -> vector<8x8x16xf32>
    %41 = arith.truncf %40 : vector<8x8x16xf32> to vector<8x8x16xbf16>
    "tpu.trace_start"() <{level = 10 : i32, message = "gqd,gkd->gqk"}> : () -> ()
    %cst_8 = arith.constant dense<0.000000e+00> : vector<8x8x8xf32>
    %42 = tpu.matmul %21, %31, %cst_8 {dimension_numbers = #tpu.dot_dimension_numbers<[2], [2], [1], [1], [0, 0, 0, 1, 1, 1], [0], [0]>} : vector<8x8x16xbf16>, vector<8x8x16xbf16>, vector<8x8x8xf32> -> vector<8x8x8xf32>
    "tpu.trace_stop"() : () -> ()
    %c0_9 = arith.constant 0 : index
    %c0_10 = arith.constant 0 : index
    %c0_11 = arith.constant 0 : index
    %43 = vector.load %arg2[%c0_9, %c0_10, %c0_11] : memref<2x1x8xf32, #tpu.memory_space<vmem>>, vector<2x1x8xf32>
    %cst_12 = arith.constant 0.000000e+00 : f32
    %44 = vector.broadcast %cst_12 : f32 to vector<2x1x8xf32>
    %45 = arith.cmpf oeq, %43, %44 : vector<2x1x8xf32>
    %cst_13 = arith.constant -1.000000e+09 : f32
    %cst_14 = arith.constant 0.000000e+00 : f32
    %46 = vector.broadcast %cst_13 : f32 to vector<2x1x8xf32>
    %47 = vector.broadcast %cst_14 : f32 to vector<2x1x8xf32>
    %48 = arith.select %45, %46, %47 : vector<2x1x8xi1>, vector<2x1x8xf32>
    %49 = vector.shape_cast %42 : vector<8x8x8xf32> to vector<4x2x8x8xf32>
    %50 = vector.shape_cast %48 : vector<2x1x8xf32> to vector<1x2x1x8xf32>
    %51 = vector.broadcast %50 : vector<1x2x1x8xf32> to vector<4x2x8x8xf32>
    %52 = arith.addf %49, %51 : vector<4x2x8x8xf32>
    %cst_15 = arith.constant dense<0xFF800000> : vector<4x2x8xf32>
    %53 = vector.multi_reduction <maximumf>, %52, %cst_15 [3] : vector<4x2x8x8xf32> to vector<4x2x8xf32>
    %cst_16 = arith.constant 0xFF800000 : f32
    %54 = vector.broadcast %cst_16 : f32 to vector<4x2x8xf32>
    %55 = arith.maximumf %54, %53 : vector<4x2x8xf32>
    %56 = vector.shape_cast %55 : vector<4x2x8xf32> to vector<4x2x8x1xf32>
    %57 = vector.broadcast %56 : vector<4x2x8x1xf32> to vector<4x2x8x8xf32>
    %58 = arith.subf %52, %57 : vector<4x2x8x8xf32>
    %59 = math.exp %58 : vector<4x2x8x8xf32>
    %cst_17 = arith.constant dense<0.000000e+00> : vector<4x2x8xf32>
    %60 = vector.multi_reduction <add>, %59, %cst_17 [3] : vector<4x2x8x8xf32> to vector<4x2x8xf32>
    %61 = vector.shape_cast %60 : vector<4x2x8xf32> to vector<4x2x8x1xf32>
    %62 = vector.broadcast %61 : vector<4x2x8x1xf32> to vector<4x2x8x8xf32>
    %63 = arith.divf %59, %62 : vector<4x2x8x8xf32>
    %64 = vector.shape_cast %63 : vector<4x2x8x8xf32> to vector<8x8x8xf32>
    %65 = arith.truncf %64 : vector<8x8x8xf32> to vector<8x8x8xbf16>
    "tpu.trace_start"() <{level = 10 : i32, message = "gqk,gkd->gqd"}> : () -> ()
    %cst_18 = arith.constant dense<0.000000e+00> : vector<8x8x16xf32>
    %66 = tpu.matmul %65, %41, %cst_18 {dimension_numbers = #tpu.dot_dimension_numbers<[2], [1], [1], [2], [0, 0, 0, 1, 1, 2], [0], [0]>} : vector<8x8x8xbf16>, vector<8x8x16xbf16>, vector<8x8x16xf32> -> vector<8x8x16xf32>
    "tpu.trace_stop"() : () -> ()
    %67 = vector.shape_cast %66 : vector<8x8x16xf32> to vector<4x16x16xf32>
    %68 = arith.truncf %67 : vector<4x16x16xf32> to vector<4x16x16xbf16>
    %c0_19 = arith.constant 0 : index
    %c0_20 = arith.constant 0 : index
    %c0_21 = arith.constant 0 : index
    %c0_22 = arith.constant 0 : index
    %69 = vector.load %arg7[%c0_19, %c0_20, %c0_21, %c0_22] : memref<1x4x16x64xbf16, #tpu.memory_space<vmem>>, vector<1x4x16x64xbf16>
    %70 = vector.shape_cast %69 : vector<1x4x16x64xbf16> to vector<4x16x64xbf16>
    "tpu.trace_start"() <{level = 10 : i32, message = "htd,hdo->hto"}> : () -> ()
    %cst_23 = arith.constant dense<0.000000e+00> : vector<4x16x64xf32>
    %71 = tpu.matmul %68, %70, %cst_23 {dimension_numbers = #tpu.dot_dimension_numbers<[2], [1], [1], [2], [0, 0, 0, 1, 1, 2], [0], [0]>} : vector<4x16x16xbf16>, vector<4x16x64xbf16>, vector<4x16x64xf32> -> vector<4x16x64xf32>
    "tpu.trace_stop"() : () -> ()
    %cst_24 = arith.constant dense<0.000000e+00> : vector<16x64xf32>
    %72 = vector.multi_reduction <add>, %71, %cst_24 [0] : vector<4x16x64xf32> to vector<16x64xf32>
    %c0_25 = arith.constant 0 : index
    %c0_26 = arith.constant 0 : index
    %c0_27 = arith.constant 0 : index
    %73 = vector.load %arg8[%c0_25, %c0_26, %c0_27] : memref<1x1x64xf32, #tpu.memory_space<vmem>>, vector<1x1x64xf32>
    %74 = vector.shape_cast %73 : vector<1x1x64xf32> to vector<1x64xf32>
    %75 = vector.broadcast %74 : vector<1x64xf32> to vector<16x64xf32>
    %76 = arith.addf %72, %75 : vector<16x64xf32>
    %77 = arith.addf %76, %3 : vector<16x64xf32>
    %c0_28 = arith.constant 0 : index
    %c0_29 = arith.constant 0 : index
    %c0_30 = arith.constant 0 : index
    %78 = vector.load %arg9[%c0_28, %c0_29, %c0_30] : memref<1x1x64xf32, #tpu.memory_space<vmem>>, vector<1x1x64xf32>
    %79 = vector.shape_cast %78 : vector<1x1x64xf32> to vector<1x64xf32>
    %c0_31 = arith.constant 0 : index
    %c0_32 = arith.constant 0 : index
    %c0_33 = arith.constant 0 : index
    %80 = vector.load %arg10[%c0_31, %c0_32, %c0_33] : memref<1x1x64xf32, #tpu.memory_space<vmem>>, vector<1x1x64xf32>
    %81 = vector.shape_cast %80 : vector<1x1x64xf32> to vector<1x64xf32>
    %cst_34 = arith.constant dense<0.000000e+00> : vector<16xf32>
    %82 = vector.multi_reduction <add>, %77, %cst_34 [1] : vector<16x64xf32> to vector<16xf32>
    %83 = vector.shape_cast %82 : vector<16xf32> to vector<16x1xf32>
    %cst_35 = arith.constant 6.400000e+01 : f32
    %84 = vector.broadcast %cst_35 : f32 to vector<16x1xf32>
    %85 = arith.divf %83, %84 : vector<16x1xf32>
    %86 = vector.broadcast %85 : vector<16x1xf32> to vector<16x64xf32>
    %87 = arith.subf %77, %86 : vector<16x64xf32>
    %88 = arith.mulf %87, %87 : vector<16x64xf32>
    %cst_36 = arith.constant dense<0.000000e+00> : vector<16xf32>
    %89 = vector.multi_reduction <add>, %88, %cst_36 [1] : vector<16x64xf32> to vector<16xf32>
    %90 = vector.shape_cast %89 : vector<16xf32> to vector<16x1xf32>
    %cst_37 = arith.constant 6.400000e+01 : f32
    %91 = vector.broadcast %cst_37 : f32 to vector<16x1xf32>
    %92 = arith.divf %90, %91 : vector<16x1xf32>
    %cst_38 = arith.constant 9.99999996E-13 : f32
    %93 = vector.broadcast %cst_38 : f32 to vector<16x1xf32>
    %94 = arith.addf %92, %93 : vector<16x1xf32>
    %95 = math.rsqrt %94 : vector<16x1xf32>
    %96 = vector.broadcast %95 : vector<16x1xf32> to vector<16x64xf32>
    %97 = arith.mulf %87, %96 : vector<16x64xf32>
    %98 = vector.broadcast %79 : vector<1x64xf32> to vector<16x64xf32>
    %99 = arith.mulf %97, %98 : vector<16x64xf32>
    %100 = vector.broadcast %81 : vector<1x64xf32> to vector<16x64xf32>
    %101 = arith.addf %99, %100 : vector<16x64xf32>
    %c0_39 = arith.constant 0 : index
    %c0_40 = arith.constant 0 : index
    %c0_41 = arith.constant 0 : index
    %102 = vector.load %arg12[%c0_39, %c0_40, %c0_41] : memref<1x1x128xf32, #tpu.memory_space<vmem>>, vector<1x1x128xf32>
    %103 = vector.shape_cast %102 : vector<1x1x128xf32> to vector<1x128xf32>
    %104 = arith.truncf %101 : vector<16x64xf32> to vector<16x64xbf16>
    %c0_42 = arith.constant 0 : index
    %c0_43 = arith.constant 0 : index
    %c0_44 = arith.constant 0 : index
    %105 = vector.load %arg11[%c0_42, %c0_43, %c0_44] : memref<1x64x128xbf16, #tpu.memory_space<vmem>>, vector<1x64x128xbf16>
    %106 = vector.shape_cast %105 : vector<1x64x128xbf16> to vector<64x128xbf16>
    %cst_45 = arith.constant dense<0.000000e+00> : vector<16x128xf32>
    %107 = tpu.matmul %104, %106, %cst_45 {dimension_numbers = #tpu.dot_dimension_numbers<[1], [0], [0], [1], [0, 0, 1, 1], [], []>} : vector<16x64xbf16>, vector<64x128xbf16>, vector<16x128xf32> -> vector<16x128xf32>
    %108 = vector.broadcast %103 : vector<1x128xf32> to vector<16x128xf32>
    %109 = arith.addf %107, %108 : vector<16x128xf32>
    %cst_46 = arith.constant 5.000000e-01 : f32
    %110 = vector.broadcast %cst_46 : f32 to vector<16x128xf32>
    %111 = arith.mulf %110, %109 : vector<16x128xf32>
    %cst_47 = arith.constant 4.471500e-02 : f32
    %112 = vector.broadcast %cst_47 : f32 to vector<16x128xf32>
    %113 = arith.mulf %112, %109 : vector<16x128xf32>
    %114 = arith.mulf %113, %109 : vector<16x128xf32>
    %115 = arith.mulf %114, %109 : vector<16x128xf32>
    %116 = arith.addf %109, %115 : vector<16x128xf32>
    %cst_48 = arith.constant 0.797884583 : f32
    %117 = vector.broadcast %cst_48 : f32 to vector<16x128xf32>
    %118 = arith.mulf %117, %116 : vector<16x128xf32>
    %119 = math.tanh %118 : vector<16x128xf32>
    %cst_49 = arith.constant 1.000000e+00 : f32
    %120 = vector.broadcast %cst_49 : f32 to vector<16x128xf32>
    %121 = arith.addf %120, %119 : vector<16x128xf32>
    %122 = arith.mulf %111, %121 : vector<16x128xf32>
    %c0_50 = arith.constant 0 : index
    %c0_51 = arith.constant 0 : index
    %c0_52 = arith.constant 0 : index
    %123 = vector.load %arg14[%c0_50, %c0_51, %c0_52] : memref<1x1x64xf32, #tpu.memory_space<vmem>>, vector<1x1x64xf32>
    %124 = vector.shape_cast %123 : vector<1x1x64xf32> to vector<1x64xf32>
    %125 = arith.truncf %122 : vector<16x128xf32> to vector<16x128xbf16>
    %c0_53 = arith.constant 0 : index
    %c0_54 = arith.constant 0 : index
    %c0_55 = arith.constant 0 : index
    %126 = vector.load %arg13[%c0_53, %c0_54, %c0_55] : memref<1x128x64xbf16, #tpu.memory_space<vmem>>, vector<1x128x64xbf16>
    %127 = vector.shape_cast %126 : vector<1x128x64xbf16> to vector<128x64xbf16>
    %cst_56 = arith.constant dense<0.000000e+00> : vector<16x64xf32>
    %128 = tpu.matmul %125, %127, %cst_56 {dimension_numbers = #tpu.dot_dimension_numbers<[1], [0], [0], [1], [0, 0, 1, 1], [], []>} : vector<16x128xbf16>, vector<128x64xbf16>, vector<16x64xf32> -> vector<16x64xf32>
    %129 = vector.broadcast %124 : vector<1x64xf32> to vector<16x64xf32>
    %130 = arith.addf %128, %129 : vector<16x64xf32>
    %131 = arith.addf %130, %101 : vector<16x64xf32>
    %c0_57 = arith.constant 0 : index
    %c0_58 = arith.constant 0 : index
    %c0_59 = arith.constant 0 : index
    %132 = vector.load %arg15[%c0_57, %c0_58, %c0_59] : memref<1x1x64xf32, #tpu.memory_space<vmem>>, vector<1x1x64xf32>
    %133 = vector.shape_cast %132 : vector<1x1x64xf32> to vector<1x64xf32>
    %c0_60 = arith.constant 0 : index
    %c0_61 = arith.constant 0 : index
    %c0_62 = arith.constant 0 : index
    %134 = vector.load %arg16[%c0_60, %c0_61, %c0_62] : memref<1x1x64xf32, #tpu.memory_space<vmem>>, vector<1x1x64xf32>
    %135 = vector.shape_cast %134 : vector<1x1x64xf32> to vector<1x64xf32>
    %cst_63 = arith.constant dense<0.000000e+00> : vector<16xf32>
    %136 = vector.multi_reduction <add>, %131, %cst_63 [1] : vector<16x64xf32> to vector<16xf32>
    %137 = vector.shape_cast %136 : vector<16xf32> to vector<16x1xf32>
    %cst_64 = arith.constant 6.400000e+01 : f32
    %138 = vector.broadcast %cst_64 : f32 to vector<16x1xf32>
    %139 = arith.divf %137, %138 : vector<16x1xf32>
    %140 = vector.broadcast %139 : vector<16x1xf32> to vector<16x64xf32>
    %141 = arith.subf %131, %140 : vector<16x64xf32>
    %142 = arith.mulf %141, %141 : vector<16x64xf32>
    %cst_65 = arith.constant dense<0.000000e+00> : vector<16xf32>
    %143 = vector.multi_reduction <add>, %142, %cst_65 [1] : vector<16x64xf32> to vector<16xf32>
    %144 = vector.shape_cast %143 : vector<16xf32> to vector<16x1xf32>
    %cst_66 = arith.constant 6.400000e+01 : f32
    %145 = vector.broadcast %cst_66 : f32 to vector<16x1xf32>
    %146 = arith.divf %144, %145 : vector<16x1xf32>
    %cst_67 = arith.constant 9.99999996E-13 : f32
    %147 = vector.broadcast %cst_67 : f32 to vector<16x1xf32>
    %148 = arith.addf %146, %147 : vector<16x1xf32>
    %149 = math.rsqrt %148 : vector<16x1xf32>
    %150 = vector.broadcast %149 : vector<16x1xf32> to vector<16x64xf32>
    %151 = arith.mulf %141, %150 : vector<16x64xf32>
    %152 = vector.broadcast %133 : vector<1x64xf32> to vector<16x64xf32>
    %153 = arith.mulf %151, %152 : vector<16x64xf32>
    %154 = vector.broadcast %135 : vector<1x64xf32> to vector<16x64xf32>
    %155 = arith.addf %153, %154 : vector<16x64xf32>
    %c0_68 = arith.constant 0 : index
    %c0_69 = arith.constant 0 : index
    %156 = vector.load %arg22[%c0_68, %c0_69] : memref<16x64xf32, #tpu.memory_space<vmem>>, vector<16x64xf32>
    tpu.vector_store %arg22[%c0_68, %c0_69], %155 {strides = array<i32>} : memref<16x64xf32, #tpu.memory_space<vmem>>, vector<16x64xf32>,
    %c1_i32 = arith.constant 1 : i32
    %157 = arith.cmpi eq, %arg0, %c1_i32 : i32
    %158 = arith.extui %157 : i1 to i32
    %c0_i32_70 = arith.constant 0 : i32
    %159 = arith.cmpi ne, %158, %c0_i32_70 : i32
    scf.if %159 {
      %160 = vector.shape_cast %155 : vector<16x64xf32> to vector<2x8x64xf32>
      %161 = vector.extract_strided_slice %160 {offsets = [0, 0, 0], sizes = [2, 1, 64], strides = [1, 1, 1]} : vector<2x8x64xf32> to vector<2x1x64xf32>
      %162 = vector.shape_cast %161 : vector<2x1x64xf32> to vector<2x64xf32>
      %c0_71 = arith.constant 0 : index
      %c0_72 = arith.constant 0 : index
      %163 = vector.load %arg18[%c0_71, %c0_72] : memref<1x64xf32, #tpu.memory_space<vmem>>, vector<1x64xf32>
      %164 = arith.truncf %162 : vector<2x64xf32> to vector<2x64xbf16>
      %c0_73 = arith.constant 0 : index
      %c0_74 = arith.constant 0 : index
      %165 = vector.load %arg17[%c0_73, %c0_74] : memref<64x64xbf16, #tpu.memory_space<vmem>>, vector<64x64xbf16>
      %cst_75 = arith.constant dense<0.000000e+00> : vector<2x64xf32>
      %166 = tpu.matmul %164, %165, %cst_75 {dimension_numbers = #tpu.dot_dimension_numbers<[1], [0], [0], [1], [0, 0, 1, 1], [], []>} : vector<2x64xbf16>, vector<64x64xbf16>, vector<2x64xf32> -> vector<2x64xf32>
      %167 = vector.broadcast %163 : vector<1x64xf32> to vector<2x64xf32>
      %168 = arith.addf %166, %167 : vector<2x64xf32>
      %cst_76 = arith.constant 0.000000e+00 : f32
      %169 = vector.broadcast %cst_76 : f32 to vector<2x64xf32>
      %170 = arith.maximumf %168, %169 : vector<2x64xf32>
      %c0_77 = arith.constant 0 : index
      %c0_78 = arith.constant 0 : index
      %171 = vector.load %arg20[%c0_77, %c0_78] : memref<1x128xf32, #tpu.memory_space<vmem>>, vector<1x128xf32>
      %172 = arith.truncf %170 : vector<2x64xf32> to vector<2x64xbf16>
      %c0_79 = arith.constant 0 : index
      %c0_80 = arith.constant 0 : index
      %173 = vector.load %arg19[%c0_79, %c0_80] : memref<64x128xbf16, #tpu.memory_space<vmem>>, vector<64x128xbf16>
      %cst_81 = arith.constant dense<0.000000e+00> : vector<2x128xf32>
      %174 = tpu.matmul %172, %173, %cst_81 {dimension_numbers = #tpu.dot_dimension_numbers<[1], [0], [0], [1], [0, 0, 1, 1], [], []>} : vector<2x64xbf16>, vector<64x128xbf16>, vector<2x128xf32> -> vector<2x128xf32>
      %175 = vector.broadcast %171 : vector<1x128xf32> to vector<2x128xf32>
      %176 = arith.addf %174, %175 : vector<2x128xf32>
      %c0_82 = arith.constant 0 : index
      %c0_83 = arith.constant 0 : index
      %177 = vector.load %arg21[%c0_82, %c0_83] : memref<2x128xf32, #tpu.memory_space<vmem>>, vector<2x128xf32>
      tpu.vector_store %arg21[%c0_82, %c0_83], %176 {strides = array<i32>} : memref<2x128xf32, #tpu.memory_space<vmem>>, vector<2x128xf32>,
    } else {
    }
    return
  }
  func.func @transform_0(%arg0: i32) -> (i32, i32) {
    %c0_i32 = arith.constant 0 : i32
    %c0_i32_0 = arith.constant 0 : i32
    %c0_i32_1 = arith.constant 0 : i32
    return %c0_i32, %c0_i32_0 : i32, i32
  }
  func.func @transform_1(%arg0: i32) -> (i32, i32, i32) {
    %c0_i32 = arith.constant 0 : i32
    %c0_i32_0 = arith.constant 0 : i32
    %c0_i32_1 = arith.constant 0 : i32
    %c0_i32_2 = arith.constant 0 : i32
    return %c0_i32, %c0_i32_0, %c0_i32_1 : i32, i32, i32
  }
  func.func @transform_2(%arg0: i32) -> (i32, i32) {
    %c0_i32 = arith.constant 0 : i32
    %c0_i32_0 = arith.constant 0 : i32
    %c0_i32_1 = arith.constant 0 : i32
    return %c0_i32, %c0_i32_0 : i32, i32
  }
  func.func @transform_3(%arg0: i32) -> (i32, i32) {
    %c0_i32 = arith.constant 0 : i32
    %c0_i32_0 = arith.constant 0 : i32
    %c0_i32_1 = arith.constant 0 : i32
    return %c0_i32, %c0_i32_0 : i32, i32
  }
  func.func @transform_4(%arg0: i32) -> (i32, i32, i32) {
    %c0_i32 = arith.constant 0 : i32
    %c0_i32_0 = arith.constant 0 : i32
    %c0_i32_1 = arith.constant 0 : i32
    return %arg0, %c0_i32, %c0_i32_0 : i32, i32, i32
  }
  func.func @transform_5(%arg0: i32) -> (i32, i32, i32) {
    %c0_i32 = arith.constant 0 : i32
    %c0_i32_0 = arith.constant 0 : i32
    %c0_i32_1 = arith.constant 0 : i32
    return %arg0, %c0_i32, %c0_i32_0 : i32, i32, i32
  }
  func.func @transform_6(%arg0: i32) -> (i32, i32, i32, i32) {
    %c0_i32 = arith.constant 0 : i32
    %c0_i32_0 = arith.constant 0 : i32
    %c0_i32_1 = arith.constant 0 : i32
    %c0_i32_2 = arith.constant 0 : i32
    return %arg0, %c0_i32, %c0_i32_0, %c0_i32_1 : i32, i32, i32, i32
  }
  func.func @transform_7(%arg0: i32) -> (i32, i32, i32) {
    %c0_i32 = arith.constant 0 : i32
    %c0_i32_0 = arith.constant 0 : i32
    %c0_i32_1 = arith.constant 0 : i32
    return %arg0, %c0_i32, %c0_i32_0 : i32, i32, i32
  }
  func.func @transform_8(%arg0: i32) -> (i32, i32, i32) {
    %c0_i32 = arith.constant 0 : i32
    %c0_i32_0 = arith.constant 0 : i32
    %c0_i32_1 = arith.constant 0 : i32
    return %arg0, %c0_i32, %c0_i32_0 : i32, i32, i32
  }
  func.func @transform_9(%arg0: i32) -> (i32, i32, i32) {
    %c0_i32 = arith.constant 0 : i32
    %c0_i32_0 = arith.constant 0 : i32
    %c0_i32_1 = arith.constant 0 : i32
    return %arg0, %c0_i32, %c0_i32_0 : i32, i32, i32
  }
  func.func @transform_10(%arg0: i32) -> (i32, i32, i32) {
    %c0_i32 = arith.constant 0 : i32
    %c0_i32_0 = arith.constant 0 : i32
    %c0_i32_1 = arith.constant 0 : i32
    return %arg0, %c0_i32, %c0_i32_0 : i32, i32, i32
  }
  func.func @transform_11(%arg0: i32) -> (i32, i32, i32) {
    %c0_i32 = arith.constant 0 : i32
    %c0_i32_0 = arith.constant 0 : i32
    %c0_i32_1 = arith.constant 0 : i32
    return %arg0, %c0_i32, %c0_i32_0 : i32, i32, i32
  }
  func.func @transform_12(%arg0: i32) -> (i32, i32, i32) {
    %c0_i32 = arith.constant 0 : i32
    %c0_i32_0 = arith.constant 0 : i32
    %c0_i32_1 = arith.constant 0 : i32
    return %arg0, %c0_i32, %c0_i32_0 : i32, i32, i32
  }
  func.func @transform_13(%arg0: i32) -> (i32, i32, i32) {
    %c0_i32 = arith.constant 0 : i32
    %c0_i32_0 = arith.constant 0 : i32
    %c0_i32_1 = arith.constant 0 : i32
    return %arg0, %c0_i32, %c0_i32_0 : i32, i32, i32
  }
  func.func @transform_14(%arg0: i32) -> (i32, i32, i32) {
    %c0_i32 = arith.constant 0 : i32
    %c0_i32_0 = arith.constant 0 : i32
    %c0_i32_1 = arith.constant 0 : i32
    return %arg0, %c0_i32, %c0_i32_0 : i32, i32, i32
  }
  func.func @transform_15(%arg0: i32) -> (i32, i32, i32) {
    %c0_i32 = arith.constant 0 : i32
    %c0_i32_0 = arith.constant 0 : i32
    %c0_i32_1 = arith.constant 0 : i32
    return %arg0, %c0_i32, %c0_i32_0 : i32, i32, i32
  }
  func.func @transform_16(%arg0: i32) -> (i32, i32) {
    %c0_i32 = arith.constant 0 : i32
    %c0_i32_0 = arith.constant 0 : i32
    %c0_i32_1 = arith.constant 0 : i32
    return %c0_i32, %c0_i32_0 : i32, i32
  }
  func.func @transform_17(%arg0: i32) -> (i32, i32) {
    %c0_i32 = arith.constant 0 : i32
    %c0_i32_0 = arith.constant 0 : i32
    %c0_i32_1 = arith.constant 0 : i32
    return %c0_i32, %c0_i32_0 : i32, i32
  }
  func.func @transform_18(%arg0: i32) -> (i32, i32) {
    %c0_i32 = arith.constant 0 : i32
    %c0_i32_0 = arith.constant 0 : i32
    %c0_i32_1 = arith.constant 0 : i32
    return %c0_i32, %c0_i32_0 : i32, i32
  }
  func.func @transform_19(%arg0: i32) -> (i32, i32) {
    %c0_i32 = arith.constant 0 : i32
    %c0_i32_0 = arith.constant 0 : i32
    %c0_i32_1 = arith.constant 0 : i32
    return %c0_i32, %c0_i32_0 : i32, i32
  }
  func.func @transform_20(%arg0: i32) -> (i32, i32) {
    %c0_i32 = arith.constant 0 : i32
    %c0_i32_0 = arith.constant 0 : i32
    %c0_i32_1 = arith.constant 0 : i32
    return %c0_i32, %c0_i32_0 : i32, i32
  }
}

</mosaic_0001>

<llo_original>
// kernel: distilbert_class_forward.1
$region0: #{distilbert_class_forward.1}
  #allocation0 [shape = 'u32[]', space=smem, size = 0x4, offset = 0x4, fixed_abs, tag = 'smem constant byte address 0x4 - core index']
  #allocation1 [shape = 'u32[72,128]{1,0:T(1,128)}', space=vmem, size = 0x9000, scoped, tag = 'internal scratch']
  #allocation2 [shape = 'f32[16,64]{1,0:T(8,128)}', space=vmem, size = 0x2000, scoped, tag = 'scratch operand']
  %s0 = inlined_call_operand.vmem [shape: f32[16,64], index: 0, kind: input, shape index: {}]
  %s1 = inlined_call_operand.vmem [shape: f32[2,1,8], index: 1, kind: input, shape index: {}]
  %s2 = inlined_call_operand.vmem [shape: f32[1,64], index: 2, kind: input, shape index: {}]
  %s3 = inlined_call_operand.vmem [shape: f32[1,64], index: 3, kind: input, shape index: {}]
  %s4 = inlined_call_operand.vmem [shape: bf16[2,64,192], index: 4, kind: input, shape index: {}]
  %s5 = inlined_call_operand.vmem [shape: f32[2,1,192], index: 5, kind: input, shape index: {}]
  %s6 = inlined_call_operand.vmem [shape: bf16[2,4,16,64], index: 6, kind: input, shape index: {}]
  %s7 = inlined_call_operand.vmem [shape: f32[2,1,64], index: 7, kind: input, shape index: {}]
  %s8 = inlined_call_operand.vmem [shape: f32[2,1,64], index: 8, kind: input, shape index: {}]
  %s9 = inlined_call_operand.vmem [shape: f32[2,1,64], index: 9, kind: input, shape index: {}]
  %s10 = inlined_call_operand.vmem [shape: bf16[2,64,128], index: 10, kind: input, shape index: {}]
  %s11 = inlined_call_operand.vmem [shape: f32[2,1,128], index: 11, kind: input, shape index: {}]
  %s12 = inlined_call_operand.vmem [shape: bf16[2,128,64], index: 12, kind: input, shape index: {}]
  %s13 = inlined_call_operand.vmem [shape: f32[2,1,64], index: 13, kind: input, shape index: {}]
  %s14 = inlined_call_operand.vmem [shape: f32[2,1,64], index: 14, kind: input, shape index: {}]
  %s15 = inlined_call_operand.vmem [shape: f32[2,1,64], index: 15, kind: input, shape index: {}]
  %s16 = inlined_call_operand.vmem [shape: bf16[64,64], index: 16, kind: input, shape index: {}]
  %s17 = inlined_call_operand.vmem [shape: f32[1,64], index: 17, kind: input, shape index: {}]
  %s18 = inlined_call_operand.vmem [shape: bf16[64,128], index: 18, kind: input, shape index: {}]
  %s19 = inlined_call_operand.vmem [shape: f32[1,128], index: 19, kind: input, shape index: {}]
  %s20 = inlined_call_operand.hbm [shape: f32[2,128], index: 20, kind: output, shape index: {}]
  %s21 = sld [smem:[#allocation0]]
  $region121: #{distilbert_class_forward.1} parent=0
    _
  %s23 = ssub.s32 1, %s21
  %s24 = scalar_select 0, %s23, %s21
  $region1: #{distilbert_class_forward.1} parent=0
    #allocation3 [shape = 'u8[1024]{0}', space=vmem, size = 0x400, scoped, tag = 'output window, operand 0, single buffered']
    #allocation4 [shape = 's32[2]{0}', space=sflag, size = 0x8, scoped, tag = 'scoped memory for distilbert_class_forward.1']
    %25 = vsyncpa [#allocation4], 0
    loop: start=0, step=1, limit=4
    $region2: #{distilbert_class_forward.1} parent=1 // loop_pre_header
      _
    $region3: #{distilbert_class_forward.1} parent=1 // loop_header
      %s27 = sphi 0, %s31
      %p28 = scmp.ge.s32.totalorder %s27, 4
      %s35 = sphi 0, %s35
      %s37 = sphi 0, %s35
      %s38 = sphi 0, %s37
      %s52 = sphi 0, %s38
      %s56 = sphi 0, %s56
      %s58 = sphi 0, %s56
      %s59 = sphi 0, %s58
      %s73 = sphi 0, %s59
      %s77 = sphi 0, %s77
      %s79 = sphi 0, %s77
      %s80 = sphi 0, %s79
      %s94 = sphi 0, %s80
      %s98 = sphi 0, %s98
      %s100 = sphi 0, %s98
      %s101 = sphi 0, %s100
      %s115 = sphi 0, %s101
      %s121 = sphi 0, %s123
      %s124 = sphi 0, %s121
      %s125 = sphi 0, %s124
      %s141 = sphi 0, %s125
      %s147 = sphi 0, %s149
      %s150 = sphi 0, %s147
      %s151 = sphi 0, %s150
      %s167 = sphi 0, %s151
      %s173 = sphi 0, %s175
      %s176 = sphi 0, %s173
      %s177 = sphi 0, %s176
      %s193 = sphi 0, %s177
      %s199 = sphi 0, %s201
      %s202 = sphi 0, %s199
      %s203 = sphi 0, %s202
      %s219 = sphi 0, %s203
      %s225 = sphi 0, %s227
      %s228 = sphi 0, %s225
      %s229 = sphi 0, %s228
      %s245 = sphi 0, %s229
      %s251 = sphi 0, %s253
      %s254 = sphi 0, %s251
      %s255 = sphi 0, %s254
      %s271 = sphi 0, %s255
      %s277 = sphi 0, %s279
      %s280 = sphi 0, %s277
      %s281 = sphi 0, %s280
      %s297 = sphi 0, %s281
      %s303 = sphi 0, %s305
      %s306 = sphi 0, %s303
      %s307 = sphi 0, %s306
      %s323 = sphi 0, %s307
      %s329 = sphi 0, %s331
      %s332 = sphi 0, %s329
      %s333 = sphi 0, %s332
      %s349 = sphi 0, %s333
      %s355 = sphi 0, %s357
      %s358 = sphi 0, %s355
      %s359 = sphi 0, %s358
      %s375 = sphi 0, %s359
      %s381 = sphi 0, %s383
      %s384 = sphi 0, %s381
      %s385 = sphi 0, %s384
      %s401 = sphi 0, %s385
      %s407 = sphi 0, %s409
      %s410 = sphi 0, %s407
      %s411 = sphi 0, %s410
      %s427 = sphi 0, %s411
      %s431 = sphi 0, %s431
      %s433 = sphi 0, %s431
      %s434 = sphi 0, %s433
      %s448 = sphi 0, %s434
      %s452 = sphi 0, %s452
      %s454 = sphi 0, %s452
      %s455 = sphi 0, %s454
      %s469 = sphi 0, %s455
      %s473 = sphi 0, %s473
      %s475 = sphi 0, %s473
      %s476 = sphi 0, %s475
      %s490 = sphi 0, %s476
      %s494 = sphi 0, %s494
      %s496 = sphi 0, %s494
      %s497 = sphi 0, %s496
      %s511 = sphi 0, %s497
      %s515 = sphi 0, %s515
      %s517 = sphi 0, %s515
      %s518 = sphi 0, %s517
      %s532 = sphi 0, %s518
    $region4: #{distilbert_class_forward.1} parent=1 // loop_header_branch
      %30 = sbr.rel (%p28) target = $region8
    $region5: #{distilbert_class_forward.1} parent=1 // loop_body
      %s32 = ssub.s32 %s27, 1
      %s33 = ssub.s32 %s27, 2
      %s34 = sadd.s32 %s27, 1
      %s36 = sadd.s32 %s35, 1
      %p39 = scmp.eq.s32.totalorder %s27, 1
      %p40 = scmp.ne.s32.totalorder %s35, %s37
      %p41 = scmp.eq.s32.totalorder %s27, 0
      %p42 = por %p40, %p41
      %p43 = scmp.ne.s32.totalorder %s35, %s37
      %p44 = scmp.eq.s32.totalorder %s32, 1
      %p45 = por %p43, %p44
      %p46 = scmp.ne.s32.totalorder %s37, %s38
      %p47 = scmp.eq.s32.totalorder %s32, 0
      %p48 = por %p46, %p47
      %p49 = scmp.ne.s32.totalorder %s37, %s38
      %p50 = scmp.eq.s32.totalorder %s33, 1
      %p51 = por %p49, %p50
      %p53 = scmp.ne.s32.totalorder %s38, %s52
      %p54 = scmp.eq.s32.totalorder %s33, 0
      %p55 = por %p53, %p54
      %s57 = sadd.s32 %s56, 1
      %p60 = scmp.eq.s32.totalorder %s27, 1
      %p61 = scmp.ne.s32.totalorder %s56, %s58
      %p62 = scmp.eq.s32.totalorder %s27, 0
      %p63 = por %p61, %p62
      %p64 = scmp.ne.s32.totalorder %s56, %s58
      %p65 = scmp.eq.s32.totalorder %s32, 1
      %p66 = por %p64, %p65
      %p67 = scmp.ne.s32.totalorder %s58, %s59
      %p68 = scmp.eq.s32.totalorder %s32, 0
      %p69 = por %p67, %p68
      %p70 = scmp.ne.s32.totalorder %s58, %s59
      %p71 = scmp.eq.s32.totalorder %s33, 1
      %p72 = por %p70, %p71
      %p74 = scmp.ne.s32.totalorder %s59, %s73
      %p75 = scmp.eq.s32.totalorder %s33, 0
      %p76 = por %p74, %p75
      %s78 = sadd.s32 %s77, 1
      %p81 = scmp.eq.s32.totalorder %s27, 1
      %p82 = scmp.ne.s32.totalorder %s77, %s79
      %p83 = scmp.eq.s32.totalorder %s27, 0
      %p84 = por %p82, %p83
      %p85 = scmp.ne.s32.totalorder %s77, %s79
      %p86 = scmp.eq.s32.totalorder %s32, 1
      %p87 = por %p85, %p86
      %p88 = scmp.ne.s32.totalorder %s79, %s80
      %p89 = scmp.eq.s32.totalorder %s32, 0
      %p90 = por %p88, %p89
      %p91 = scmp.ne.s32.totalorder %s79, %s80
      %p92 = scmp.eq.s32.totalorder %s33, 1
      %p93 = por %p91, %p92
      %p95 = scmp.ne.s32.totalorder %s80, %s94
      %p96 = scmp.eq.s32.totalorder %s33, 0
      %p97 = por %p95, %p96
      %s99 = sadd.s32 %s98, 1
      %p102 = scmp.eq.s32.totalorder %s27, 1
      %p103 = scmp.ne.s32.totalorder %s98, %s100
      %p104 = scmp.eq.s32.totalorder %s27, 0
      %p105 = por %p103, %p104
      %p106 = scmp.ne.s32.totalorder %s98, %s100
      %p107 = scmp.eq.s32.totalorder %s32, 1
      %p108 = por %p106, %p107
      %p109 = scmp.ne.s32.totalorder %s100, %s101
      %p110 = scmp.eq.s32.totalorder %s32, 0
      %p111 = por %p109, %p110
      %p112 = scmp.ne.s32.totalorder %s100, %s101
      %p113 = scmp.eq.s32.totalorder %s33, 1
      %p114 = por %p112, %p113
      %p116 = scmp.ne.s32.totalorder %s101, %s115
      %p117 = scmp.eq.s32.totalorder %s33, 0
      %p118 = por %p116, %p117
      %s119 = ssub.s32 %s27, %s34
      %p120 = scmp.eq.s32.totalorder %s119, 0
      %s122 = sadd.s32 %s121, 1
      %s123 = scalar_select %p120, %s121, %s122
      %p126 = pneg %p120
      %p127 = scmp.eq.s32.totalorder %s27, 1
      %p128 = por %p126, %p127
      %p129 = scmp.ne.s32.totalorder %s121, %s124
      %p130 = scmp.eq.s32.totalorder %s27, 0
      %p131 = por %p129, %p130
      %p132 = scmp.ne.s32.totalorder %s121, %s124
      %p133 = scmp.eq.s32.totalorder %s32, 1
      %p134 = por %p132, %p133
      %p135 = scmp.ne.s32.totalorder %s124, %s125
      %p136 = scmp.eq.s32.totalorder %s32, 0
      %p137 = por %p135, %p136
      %p138 = scmp.ne.s32.totalorder %s124, %s125
      %p139 = scmp.eq.s32.totalorder %s33, 1
      %p140 = por %p138, %p139
      %p142 = scmp.ne.s32.totalorder %s125, %s141
      %p143 = scmp.eq.s32.totalorder %s33, 0
      %p144 = por %p142, %p143
      %s145 = ssub.s32 %s27, %s34
      %p146 = scmp.eq.s32.totalorder %s145, 0
      %s148 = sadd.s32 %s147, 1
      %s149 = scalar_select %p146, %s147, %s148
      %p152 = pneg %p146
      %p153 = scmp.eq.s32.totalorder %s27, 1
      %p154 = por %p152, %p153
      %p155 = scmp.ne.s32.totalorder %s147, %s150
      %p156 = scmp.eq.s32.totalorder %s27, 0
      %p157 = por %p155, %p156
      %p158 = scmp.ne.s32.totalorder %s147, %s150
      %p159 = scmp.eq.s32.totalorder %s32, 1
      %p160 = por %p158, %p159
      %p161 = scmp.ne.s32.totalorder %s150, %s151
      %p162 = scmp.eq.s32.totalorder %s32, 0
      %p163 = por %p161, %p162
      %p164 = scmp.ne.s32.totalorder %s150, %s151
      %p165 = scmp.eq.s32.totalorder %s33, 1
      %p166 = por %p164, %p165
      %p168 = scmp.ne.s32.totalorder %s151, %s167
      %p169 = scmp.eq.s32.totalorder %s33, 0
      %p170 = por %p168, %p169
      %s171 = ssub.s32 %s27, %s34
      %p172 = scmp.eq.s32.totalorder %s171, 0
      %s174 = sadd.s32 %s173, 1
      %s175 = scalar_select %p172, %s173, %s174
      %p178 = pneg %p172
      %p179 = scmp.eq.s32.totalorder %s27, 1
      %p180 = por %p178, %p179
      %p181 = scmp.ne.s32.totalorder %s173, %s176
      %p182 = scmp.eq.s32.totalorder %s27, 0
      %p183 = por %p181, %p182
      %p184 = scmp.ne.s32.totalorder %s173, %s176
      %p185 = scmp.eq.s32.totalorder %s32, 1
      %p186 = por %p184, %p185
      %p187 = scmp.ne.s32.totalorder %s176, %s177
      %p188 = scmp.eq.s32.totalorder %s32, 0
      %p189 = por %p187, %p188
      %p190 = scmp.ne.s32.totalorder %s176, %s177
      %p191 = scmp.eq.s32.totalorder %s33, 1
      %p192 = por %p190, %p191
      %p194 = scmp.ne.s32.totalorder %s177, %s193
      %p195 = scmp.eq.s32.totalorder %s33, 0
      %p196 = por %p194, %p195
      %s197 = ssub.s32 %s27, %s34
      %p198 = scmp.eq.s32.totalorder %s197, 0
      %s200 = sadd.s32 %s199, 1
      %s201 = scalar_select %p198, %s199, %s200
      %p204 = pneg %p198
      %p205 = scmp.eq.s32.totalorder %s27, 1
      %p206 = por %p204, %p205
      %p207 = scmp.ne.s32.totalorder %s199, %s202
      %p208 = scmp.eq.s32.totalorder %s27, 0
      %p209 = por %p207, %p208
      %p210 = scmp.ne.s32.totalorder %s199, %s202
      %p211 = scmp.eq.s32.totalorder %s32, 1
      %p212 = por %p210, %p211
      %p213 = scmp.ne.s32.totalorder %s202, %s203
      %p214 = scmp.eq.s32.totalorder %s32, 0
      %p215 = por %p213, %p214
      %p216 = scmp.ne.s32.totalorder %s202, %s203
      %p217 = scmp.eq.s32.totalorder %s33, 1
      %p218 = por %p216, %p217
      %p220 = scmp.ne.s32.totalorder %s203, %s219
      %p221 = scmp.eq.s32.totalorder %s33, 0
      %p222 = por %p220, %p221
      %s223 = ssub.s32 %s27, %s34
      %p224 = scmp.eq.s32.totalorder %s223, 0
      %s226 = sadd.s32 %s225, 1
      %s227 = scalar_select %p224, %s225, %s226
      %p230 = pneg %p224
      %p231 = scmp.eq.s32.totalorder %s27, 1
      %p232 = por %p230, %p231
      %p233 = scmp.ne.s32.totalorder %s225, %s228
      %p234 = scmp.eq.s32.totalorder %s27, 0
      %p235 = por %p233, %p234
      %p236 = scmp.ne.s32.totalorder %s225, %s228
      %p237 = scmp.eq.s32.totalorder %s32, 1
      %p238 = por %p236, %p237
      %p239 = scmp.ne.s32.totalorder %s228, %s229
      %p240 = scmp.eq.s32.totalorder %s32, 0
      %p241 = por %p239, %p240
      %p242 = scmp.ne.s32.totalorder %s228, %s229
      %p243 = scmp.eq.s32.totalorder %s33, 1
      %p244 = por %p242, %p243
      %p246 = scmp.ne.s32.totalorder %s229, %s245
      %p247 = scmp.eq.s32.totalorder %s33, 0
      %p248 = por %p246, %p247
      %s249 = ssub.s32 %s27, %s34
      %p250 = scmp.eq.s32.totalorder %s249, 0
      %s252 = sadd.s32 %s251, 1
      %s253 = scalar_select %p250, %s251, %s252
      %p256 = pneg %p250
      %p257 = scmp.eq.s32.totalorder %s27, 1
      %p258 = por %p256, %p257
      %p259 = scmp.ne.s32.totalorder %s251, %s254
      %p260 = scmp.eq.s32.totalorder %s27, 0
      %p261 = por %p259, %p260
      %p262 = scmp.ne.s32.totalorder %s251, %s254
      %p263 = scmp.eq.s32.totalorder %s32, 1
      %p264 = por %p262, %p263
      %p265 = scmp.ne.s32.totalorder %s254, %s255
      %p266 = scmp.eq.s32.totalorder %s32, 0
      %p267 = por %p265, %p266
      %p268 = scmp.ne.s32.totalorder %s254, %s255
      %p269 = scmp.eq.s32.totalorder %s33, 1
      %p270 = por %p268, %p269
      %p272 = scmp.ne.s32.totalorder %s255, %s271
      %p273 = scmp.eq.s32.totalorder %s33, 0
      %p274 = por %p272, %p273
      %s275 = ssub.s32 %s27, %s34
      %p276 = scmp.eq.s32.totalorder %s275, 0
      %s278 = sadd.s32 %s277, 1
      %s279 = scalar_select %p276, %s277, %s278
      %p282 = pneg %p276
      %p283 = scmp.eq.s32.totalorder %s27, 1
      %p284 = por %p282, %p283
      %p285 = scmp.ne.s32.totalorder %s277, %s280
      %p286 = scmp.eq.s32.totalorder %s27, 0
      %p287 = por %p285, %p286
      %p288 = scmp.ne.s32.totalorder %s277, %s280
      %p289 = scmp.eq.s32.totalorder %s32, 1
      %p290 = por %p288, %p289
      %p291 = scmp.ne.s32.totalorder %s280, %s281
      %p292 = scmp.eq.s32.totalorder %s32, 0
      %p293 = por %p291, %p292
      %p294 = scmp.ne.s32.totalorder %s280, %s281
      %p295 = scmp.eq.s32.totalorder %s33, 1
      %p296 = por %p294, %p295
      %p298 = scmp.ne.s32.totalorder %s281, %s297
      %p299 = scmp.eq.s32.totalorder %s33, 0
      %p300 = por %p298, %p299
      %s301 = ssub.s32 %s27, %s34
      %p302 = scmp.eq.s32.totalorder %s301, 0
      %s304 = sadd.s32 %s303, 1
      %s305 = scalar_select %p302, %s303, %s304
      %p308 = pneg %p302
      %p309 = scmp.eq.s32.totalorder %s27, 1
      %p310 = por %p308, %p309
      %p311 = scmp.ne.s32.totalorder %s303, %s306
      %p312 = scmp.eq.s32.totalorder %s27, 0
      %p313 = por %p311, %p312
      %p314 = scmp.ne.s32.totalorder %s303, %s306
      %p315 = scmp.eq.s32.totalorder %s32, 1
      %p316 = por %p314, %p315
      %p317 = scmp.ne.s32.totalorder %s306, %s307
      %p318 = scmp.eq.s32.totalorder %s32, 0
      %p319 = por %p317, %p318
      %p320 = scmp.ne.s32.totalorder %s306, %s307
      %p321 = scmp.eq.s32.totalorder %s33, 1
      %p322 = por %p320, %p321
      %p324 = scmp.ne.s32.totalorder %s307, %s323
      %p325 = scmp.eq.s32.totalorder %s33, 0
      %p326 = por %p324, %p325
      %s327 = ssub.s32 %s27, %s34
      %p328 = scmp.eq.s32.totalorder %s327, 0
      %s330 = sadd.s32 %s329, 1
      %s331 = scalar_select %p328, %s329, %s330
      %p334 = pneg %p328
      %p335 = scmp.eq.s32.totalorder %s27, 1
      %p336 = por %p334, %p335
      %p337 = scmp.ne.s32.totalorder %s329, %s332
      %p338 = scmp.eq.s32.totalorder %s27, 0
      %p339 = por %p337, %p338
      %p340 = scmp.ne.s32.totalorder %s329, %s332
      %p341 = scmp.eq.s32.totalorder %s32, 1
      %p342 = por %p340, %p341
      %p343 = scmp.ne.s32.totalorder %s332, %s333
      %p344 = scmp.eq.s32.totalorder %s32, 0
      %p345 = por %p343, %p344
      %p346 = scmp.ne.s32.totalorder %s332, %s333
      %p347 = scmp.eq.s32.totalorder %s33, 1
      %p348 = por %p346, %p347
      %p350 = scmp.ne.s32.totalorder %s333, %s349
      %p351 = scmp.eq.s32.totalorder %s33, 0
      %p352 = por %p350, %p351
      %s353 = ssub.s32 %s27, %s34
      %p354 = scmp.eq.s32.totalorder %s353, 0
      %s356 = sadd.s32 %s355, 1
      %s357 = scalar_select %p354, %s355, %s356
      %p360 = pneg %p354
      %p361 = scmp.eq.s32.totalorder %s27, 1
      %p362 = por %p360, %p361
      %p363 = scmp.ne.s32.totalorder %s355, %s358
      %p364 = scmp.eq.s32.totalorder %s27, 0
      %p365 = por %p363, %p364
      %p366 = scmp.ne.s32.totalorder %s355, %s358
      %p367 = scmp.eq.s32.totalorder %s32, 1
      %p368 = por %p366, %p367
      %p369 = scmp.ne.s32.totalorder %s358, %s359
      %p370 = scmp.eq.s32.totalorder %s32, 0
      %p371 = por %p369, %p370
      %p372 = scmp.ne.s32.totalorder %s358, %s359
      %p373 = scmp.eq.s32.totalorder %s33, 1
      %p374 = por %p372, %p373
      %p376 = scmp.ne.s32.totalorder %s359, %s375
      %p377 = scmp.eq.s32.totalorder %s33, 0
      %p378 = por %p376, %p377
      %s379 = ssub.s32 %s27, %s34
      %p380 = scmp.eq.s32.totalorder %s379, 0
      %s382 = sadd.s32 %s381, 1
      %s383 = scalar_select %p380, %s381, %s382
      %p386 = pneg %p380
      %p387 = scmp.eq.s32.totalorder %s27, 1
      %p388 = por %p386, %p387
      %p389 = scmp.ne.s32.totalorder %s381, %s384
      %p390 = scmp.eq.s32.totalorder %s27, 0
      %p391 = por %p389, %p390
      %p392 = scmp.ne.s32.totalorder %s381, %s384
      %p393 = scmp.eq.s32.totalorder %s32, 1
      %p394 = por %p392, %p393
      %p395 = scmp.ne.s32.totalorder %s384, %s385
      %p396 = scmp.eq.s32.totalorder %s32, 0
      %p397 = por %p395, %p396
      %p398 = scmp.ne.s32.totalorder %s384, %s385
      %p399 = scmp.eq.s32.totalorder %s33, 1
      %p400 = por %p398, %p399
      %p402 = scmp.ne.s32.totalorder %s385, %s401
      %p403 = scmp.eq.s32.totalorder %s33, 0
      %p404 = por %p402, %p403
      %s405 = ssub.s32 %s27, %s34
      %p406 = scmp.eq.s32.totalorder %s405, 0
      %s408 = sadd.s32 %s407, 1
      %s409 = scalar_select %p406, %s407, %s408
      %p412 = pneg %p406
      %p413 = scmp.eq.s32.totalorder %s27, 1
      %p414 = por %p412, %p413
      %p415 = scmp.ne.s32.totalorder %s407, %s410
      %p416 = scmp.eq.s32.totalorder %s27, 0
      %p417 = por %p415, %p416
      %p418 = scmp.ne.s32.totalorder %s407, %s410
      %p419 = scmp.eq.s32.totalorder %s32, 1
      %p420 = por %p418, %p419
      %p421 = scmp.ne.s32.totalorder %s410, %s411
      %p422 = scmp.eq.s32.totalorder %s32, 0
      %p423 = por %p421, %p422
      %p424 = scmp.ne.s32.totalorder %s410, %s411
      %p425 = scmp.eq.s32.totalorder %s33, 1
      %p426 = por %p424, %p425
      %p428 = scmp.ne.s32.totalorder %s411, %s427
      %p429 = scmp.eq.s32.totalorder %s33, 0
      %p430 = por %p428, %p429
      %s432 = sadd.s32 %s431, 1
      %p435 = scmp.eq.s32.totalorder %s27, 1
      %p436 = scmp.ne.s32.totalorder %s431, %s433
      %p437 = scmp.eq.s32.totalorder %s27, 0
      %p438 = por %p436, %p437
      %p439 = scmp.ne.s32.totalorder %s431, %s433
      %p440 = scmp.eq.s32.totalorder %s32, 1
      %p441 = por %p439, %p440
      %p442 = scmp.ne.s32.totalorder %s433, %s434
      %p443 = scmp.eq.s32.totalorder %s32, 0
      %p444 = por %p442, %p443
      %p445 = scmp.ne.s32.totalorder %s433, %s434
      %p446 = scmp.eq.s32.totalorder %s33, 1
      %p447 = por %p445, %p446
      %p449 = scmp.ne.s32.totalorder %s434, %s448
      %p450 = scmp.eq.s32.totalorder %s33, 0
      %p451 = por %p449, %p450
      %s453 = sadd.s32 %s452, 1
      %p456 = scmp.eq.s32.totalorder %s27, 1
      %p457 = scmp.ne.s32.totalorder %s452, %s454
      %p458 = scmp.eq.s32.totalorder %s27, 0
      %p459 = por %p457, %p458
      %p460 = scmp.ne.s32.totalorder %s452, %s454
      %p461 = scmp.eq.s32.totalorder %s32, 1
      %p462 = por %p460, %p461
      %p463 = scmp.ne.s32.totalorder %s454, %s455
      %p464 = scmp.eq.s32.totalorder %s32, 0
      %p465 = por %p463, %p464
      %p466 = scmp.ne.s32.totalorder %s454, %s455
      %p467 = scmp.eq.s32.totalorder %s33, 1
      %p468 = por %p466, %p467
      %p470 = scmp.ne.s32.totalorder %s455, %s469
      %p471 = scmp.eq.s32.totalorder %s33, 0
      %p472 = por %p470, %p471
      %s474 = sadd.s32 %s473, 1
      %p477 = scmp.eq.s32.totalorder %s27, 1
      %p478 = scmp.ne.s32.totalorder %s473, %s475
      %p479 = scmp.eq.s32.totalorder %s27, 0
      %p480 = por %p478, %p479
      %p481 = scmp.ne.s32.totalorder %s473, %s475
      %p482 = scmp.eq.s32.totalorder %s32, 1
      %p483 = por %p481, %p482
      %p484 = scmp.ne.s32.totalorder %s475, %s476
      %p485 = scmp.eq.s32.totalorder %s32, 0
      %p486 = por %p484, %p485
      %p487 = scmp.ne.s32.totalorder %s475, %s476
      %p488 = scmp.eq.s32.totalorder %s33, 1
      %p489 = por %p487, %p488
      %p491 = scmp.ne.s32.totalorder %s476, %s490
      %p492 = scmp.eq.s32.totalorder %s33, 0
      %p493 = por %p491, %p492
      %s495 = sadd.s32 %s494, 1
      %p498 = scmp.eq.s32.totalorder %s27, 1
      %p499 = scmp.ne.s32.totalorder %s494, %s496
      %p500 = scmp.eq.s32.totalorder %s27, 0
      %p501 = por %p499, %p500
      %p502 = scmp.ne.s32.totalorder %s494, %s496
      %p503 = scmp.eq.s32.totalorder %s32, 1
      %p504 = por %p502, %p503
      %p505 = scmp.ne.s32.totalorder %s496, %s497
      %p506 = scmp.eq.s32.totalorder %s32, 0
      %p507 = por %p505, %p506
      %p508 = scmp.ne.s32.totalorder %s496, %s497
      %p509 = scmp.eq.s32.totalorder %s33, 1
      %p510 = por %p508, %p509
      %p512 = scmp.ne.s32.totalorder %s497, %s511
      %p513 = scmp.eq.s32.totalorder %s33, 0
      %p514 = por %p512, %p513
      %s516 = sadd.s32 %s515, 1
      %p519 = scmp.eq.s32.totalorder %s27, 1
      %p520 = scmp.ne.s32.totalorder %s515, %s517
      %p521 = scmp.eq.s32.totalorder %s27, 0
      %p522 = por %p520, %p521
      %p523 = scmp.ne.s32.totalorder %s515, %s517
      %p524 = scmp.eq.s32.totalorder %s32, 1
      %p525 = por %p523, %p524
      %p526 = scmp.ne.s32.totalorder %s517, %s518
      %p527 = scmp.eq.s32.totalorder %s32, 0
      %p528 = por %p526, %p527
      %p529 = scmp.ne.s32.totalorder %s517, %s518
      %p530 = scmp.eq.s32.totalorder %s33, 1
      %p531 = por %p529, %p530
      %p533 = scmp.ne.s32.totalorder %s518, %s532
      %p534 = scmp.eq.s32.totalorder %s33, 0
      %p535 = por %p533, %p534
      %p536 = scmp.le.s32.totalorder 1, %s27
      %p537 = scmp.lt.s32.totalorder %s27, 3
      %p538 = pnand %p536, %p537
      %p539 = pneg %p538
      // Predicated region
      $region9: #{distilbert_class_forward.1} parent=5 // pred_check
        _
      $region10: #{distilbert_class_forward.1} parent=5 // pred_check_branch
        %541 = sbr.rel (%p538) target = $region12
      $region11: #{distilbert_class_forward.1} parent=5 // pred_region
        %s542 = ssub.s32 %s27, 1
        // Predicated region
        $region13: #{distilbert_class_forward.1} parent=11 // pred_check
          %p543 = pneg %p48
        $region14: #{distilbert_class_forward.1} parent=11 // pred_check_branch
          %545 = sbr.rel (%p543) target = $region16
        $region15: #{distilbert_class_forward.1} parent=11 // pred_region
          _
        $region16: #{distilbert_class_forward.1} parent=11 // pred_fallthru
          _
        // Predicated region
        $region17: #{distilbert_class_forward.1} parent=11 // pred_check
          %p546 = pneg %p69
        $region18: #{distilbert_class_forward.1} parent=11 // pred_check_branch
          %548 = sbr.rel (%p546) target = $region20
        $region19: #{distilbert_class_forward.1} parent=11 // pred_region
          _
        $region20: #{distilbert_class_forward.1} parent=11 // pred_fallthru
          _
        // Predicated region
        $region21: #{distilbert_class_forward.1} parent=11 // pred_check
          %p549 = pneg %p90
        $region22: #{distilbert_class_forward.1} parent=11 // pred_check_branch
          %551 = sbr.rel (%p549) target = $region24
        $region23: #{distilbert_class_forward.1} parent=11 // pred_region
          _
        $region24: #{distilbert_class_forward.1} parent=11 // pred_fallthru
          _
        // Predicated region
        $region25: #{distilbert_class_forward.1} parent=11 // pred_check
          %p552 = pneg %p111
        $region26: #{distilbert_class_forward.1} parent=11 // pred_check_branch
          %554 = sbr.rel (%p552) target = $region28
        $region27: #{distilbert_class_forward.1} parent=11 // pred_region
          _
        $region28: #{distilbert_class_forward.1} parent=11 // pred_fallthru
          _
        // Predicated region
        $region29: #{distilbert_class_forward.1} parent=11 // pred_check
          %p555 = pneg %p444
        $region30: #{distilbert_class_forward.1} parent=11 // pred_check_branch
          %557 = sbr.rel (%p555) target = $region32
        $region31: #{distilbert_class_forward.1} parent=11 // pred_region
          _
        $region32: #{distilbert_class_forward.1} parent=11 // pred_fallthru
          _
        // Predicated region
        $region33: #{distilbert_class_forward.1} parent=11 // pred_check
          %p558 = pneg %p465
        $region34: #{distilbert_class_forward.1} parent=11 // pred_check_branch
          %560 = sbr.rel (%p558) target = $region36
        $region35: #{distilbert_class_forward.1} parent=11 // pred_region
          _
        $region36: #{distilbert_class_forward.1} parent=11 // pred_fallthru
          _
        // Predicated region
        $region37: #{distilbert_class_forward.1} parent=11 // pred_check
          %p561 = pneg %p486
        $region38: #{distilbert_class_forward.1} parent=11 // pred_check_branch
          %563 = sbr.rel (%p561) target = $region40
        $region39: #{distilbert_class_forward.1} parent=11 // pred_region
          _
        $region40: #{distilbert_class_forward.1} parent=11 // pred_fallthru
          _
        // Predicated region
        $region41: #{distilbert_class_forward.1} parent=11 // pred_check
          %p564 = pneg %p507
        $region42: #{distilbert_class_forward.1} parent=11 // pred_check_branch
          %566 = sbr.rel (%p564) target = $region44
        $region43: #{distilbert_class_forward.1} parent=11 // pred_region
          _
        $region44: #{distilbert_class_forward.1} parent=11 // pred_fallthru
          _
      $region12: #{distilbert_class_forward.1} parent=5 // pred_fallthru
        _
      %p567 = scmp.lt.s32.totalorder %s27, 2
      // Predicated region
      $region45: #{distilbert_class_forward.1} parent=5 // pred_check
        %p568 = pneg %p567
      $region46: #{distilbert_class_forward.1} parent=5 // pred_check_branch
        %570 = sbr.rel (%p568) target = $region48
      $region47: #{distilbert_class_forward.1} parent=5 // pred_region
        // Predicated region
        $region49: #{distilbert_class_forward.1} parent=47 // pred_check
          %p571 = pneg %p131
        $region50: #{distilbert_class_forward.1} parent=47 // pred_check_branch
          %573 = sbr.rel (%p571) target = $region52
        $region51: #{distilbert_class_forward.1} parent=47 // pred_region
          %p574 = scmp.lt.s32.totalorder %s27, 1
          %s575 = scalar_select %p574, %s27, 1
          %s576 = smul.addr %s575, 16
          %s577 = smul.addr %s576, 4
          %s578 = scalar_lea.vmem %s4, %s577
        $region52: #{distilbert_class_forward.1} parent=47 // pred_fallthru
          _
        // Predicated region
        $region53: #{distilbert_class_forward.1} parent=47 // pred_check
          %p579 = pneg %p157
        $region54: #{distilbert_class_forward.1} parent=47 // pred_check_branch
          %581 = sbr.rel (%p579) target = $region56
        $region55: #{distilbert_class_forward.1} parent=47 // pred_region
          %p582 = scmp.lt.s32.totalorder %s27, 1
          %s583 = scalar_select %p582, %s27, 1
          %s584 = smul.addr %s583, 2
          %s585 = scalar_lea.vmem %s5, %s584
        $region56: #{distilbert_class_forward.1} parent=47 // pred_fallthru
          _
        // Predicated region
        $region57: #{distilbert_class_forward.1} parent=47 // pred_check
          %p586 = pneg %p183
        $region58: #{distilbert_class_forward.1} parent=47 // pred_check_branch
          %588 = sbr.rel (%p586) target = $region60
        $region59: #{distilbert_class_forward.1} parent=47 // pred_region
          %p589 = scmp.lt.s32.totalorder %s27, 1
          %s590 = scalar_select %p589, %s27, 1
          %s591 = smul.addr %s590, 8
          %s592 = smul.addr %s591, 4
          %s593 = scalar_lea.vmem %s6, %s592
        $region60: #{distilbert_class_forward.1} parent=47 // pred_fallthru
          _
        // Predicated region
        $region61: #{distilbert_class_forward.1} parent=47 // pred_check
          %p594 = pneg %p209
        $region62: #{distilbert_class_forward.1} parent=47 // pred_check_branch
          %596 = sbr.rel (%p594) target = $region64
        $region63: #{distilbert_class_forward.1} parent=47 // pred_region
          %p597 = scmp.lt.s32.totalorder %s27, 1
          %s598 = scalar_select %p597, %s27, 1
          %s599 = scalar_lea.vmem %s7, %s598
        $region64: #{distilbert_class_forward.1} parent=47 // pred_fallthru
          _
        // Predicated region
        $region65: #{distilbert_class_forward.1} parent=47 // pred_check
          %p600 = pneg %p235
        $region66: #{distilbert_class_forward.1} parent=47 // pred_check_branch
          %602 = sbr.rel (%p600) target = $region68
        $region67: #{distilbert_class_forward.1} parent=47 // pred_region
          %p603 = scmp.lt.s32.totalorder %s27, 1
          %s604 = scalar_select %p603, %s27, 1
          %s605 = scalar_lea.vmem %s8, %s604
        $region68: #{distilbert_class_forward.1} parent=47 // pred_fallthru
          _
        // Predicated region
        $region69: #{distilbert_class_forward.1} parent=47 // pred_check
          %p606 = pneg %p261
        $region70: #{distilbert_class_forward.1} parent=47 // pred_check_branch
          %608 = sbr.rel (%p606) target = $region72
        $region71: #{distilbert_class_forward.1} parent=47 // pred_region
          %p609 = scmp.lt.s32.totalorder %s27, 1
          %s610 = scalar_select %p609, %s27, 1
          %s611 = scalar_lea.vmem %s9, %s610
        $region72: #{distilbert_class_forward.1} parent=47 // pred_fallthru
          _
        // Predicated region
        $region73: #{distilbert_class_forward.1} parent=47 // pred_check
          %p612 = pneg %p287
        $region74: #{distilbert_class_forward.1} parent=47 // pred_check_branch
          %614 = sbr.rel (%p612) target = $region76
        $region75: #{distilbert_class_forward.1} parent=47 // pred_region
          %p615 = scmp.lt.s32.totalorder %s27, 1
          %s616 = scalar_select %p615, %s27, 1
          %s617 = smul.addr %s616, 8
          %s618 = smul.addr %s617, 4
          %s619 = scalar_lea.vmem %s10, %s618
        $region76: #{distilbert_class_forward.1} parent=47 // pred_fallthru
          _
        // Predicated region
        $region77: #{distilbert_class_forward.1} parent=47 // pred_check
          %p620 = pneg %p313
        $region78: #{distilbert_class_forward.1} parent=47 // pred_check_branch
          %622 = sbr.rel (%p620) target = $region80
        $region79: #{distilbert_class_forward.1} parent=47 // pred_region
          %p623 = scmp.lt.s32.totalorder %s27, 1
          %s624 = scalar_select %p623, %s27, 1
          %s625 = scalar_lea.vmem %s11, %s624
        $region80: #{distilbert_class_forward.1} parent=47 // pred_fallthru
          _
        // Predicated region
        $region81: #{distilbert_class_forward.1} parent=47 // pred_check
          %p626 = pneg %p339
        $region82: #{distilbert_class_forward.1} parent=47 // pred_check_branch
          %628 = sbr.rel (%p626) target = $region84
        $region83: #{distilbert_class_forward.1} parent=47 // pred_region
          %p629 = scmp.lt.s32.totalorder %s27, 1
          %s630 = scalar_select %p629, %s27, 1
          %s631 = smul.addr %s630, 16
          %s632 = smul.addr %s631, 4
          %s633 = scalar_lea.vmem %s12, %s632
        $region84: #{distilbert_class_forward.1} parent=47 // pred_fallthru
          _
        // Predicated region
        $region85: #{distilbert_class_forward.1} parent=47 // pred_check
          %p634 = pneg %p365
        $region86: #{distilbert_class_forward.1} parent=47 // pred_check_branch
          %636 = sbr.rel (%p634) target = $region88
        $region87: #{distilbert_class_forward.1} parent=47 // pred_region
          %p637 = scmp.lt.s32.totalorder %s27, 1
          %s638 = scalar_select %p637, %s27, 1
          %s639 = scalar_lea.vmem %s13, %s638
        $region88: #{distilbert_class_forward.1} parent=47 // pred_fallthru
          _
        // Predicated region
        $region89: #{distilbert_class_forward.1} parent=47 // pred_check
          %p640 = pneg %p391
        $region90: #{distilbert_class_forward.1} parent=47 // pred_check_branch
          %642 = sbr.rel (%p640) target = $region92
        $region91: #{distilbert_class_forward.1} parent=47 // pred_region
          %p643 = scmp.lt.s32.totalorder %s27, 1
          %s644 = scalar_select %p643, %s27, 1
          %s645 = scalar_lea.vmem %s14, %s644
        $region92: #{distilbert_class_forward.1} parent=47 // pred_fallthru
          _
        // Predicated region
        $region93: #{distilbert_class_forward.1} parent=47 // pred_check
          %p646 = pneg %p417
        $region94: #{distilbert_class_forward.1} parent=47 // pred_check_branch
          %648 = sbr.rel (%p646) target = $region96
        $region95: #{distilbert_class_forward.1} parent=47 // pred_region
          %p649 = scmp.lt.s32.totalorder %s27, 1
          %s650 = scalar_select %p649, %s27, 1
          %s651 = scalar_lea.vmem %s15, %s650
        $region96: #{distilbert_class_forward.1} parent=47 // pred_fallthru
          _
      $region48: #{distilbert_class_forward.1} parent=5 // pred_fallthru
        _
      %p652 = scmp.le.s32.totalorder 1, %s27
      %p653 = scmp.lt.s32.totalorder %s27, 3
      %p654 = pnand %p652, %p653
      %p655 = pneg %p654
      // Predicated region
      $region97: #{distilbert_class_forward.1} parent=5 // pred_check
        _
      $region98: #{distilbert_class_forward.1} parent=5 // pred_check_branch
        %657 = sbr.rel (%p654) target = $region100
      $region99: #{distilbert_class_forward.1} parent=5 // pred_region
        %s658 = ssub.s32 %s27, 1
        %p659 = pneg %p48
        %p660 = pneg %p45
        %p661 = pneg %p69
        %p662 = pneg %p66
        %p663 = pneg %p90
        %p664 = pneg %p87
        %p665 = pneg %p111
        %p666 = pneg %p108
        %p667 = scmp.lt.s32.totalorder %s32, 1
        %s668 = scalar_select %p667, %s32, 1
        %s669 = smul.addr %s668, 16
        %s670 = smul.addr %s669, 4
        %s671 = scalar_lea.vmem %s4, %s670
        %p672 = pneg %p137
        %p673 = pneg %p134
        %p674 = scmp.lt.s32.totalorder %s32, 1
        %s675 = scalar_select %p674, %s32, 1
        %s676 = smul.addr %s675, 2
        %s677 = scalar_lea.vmem %s5, %s676
        %p678 = pneg %p163
        %p679 = pneg %p160
        %p680 = scmp.lt.s32.totalorder %s32, 1
        %s681 = scalar_select %p680, %s32, 1
        %s682 = smul.addr %s681, 8
        %s683 = smul.addr %s682, 4
        %s684 = scalar_lea.vmem %s6, %s683
        %p685 = pneg %p189
        %p686 = pneg %p186
        %p687 = scmp.lt.s32.totalorder %s32, 1
        %s688 = scalar_select %p687, %s32, 1
        %s689 = scalar_lea.vmem %s7, %s688
        %p690 = pneg %p215
        %p691 = pneg %p212
        %p692 = scmp.lt.s32.totalorder %s32, 1
        %s693 = scalar_select %p692, %s32, 1
        %s694 = scalar_lea.vmem %s8, %s693
        %p695 = pneg %p241
        %p696 = pneg %p238
        %p697 = scmp.lt.s32.totalorder %s32, 1
        %s698 = scalar_select %p697, %s32, 1
        %s699 = scalar_lea.vmem %s9, %s698
        %p700 = pneg %p267
        %p701 = pneg %p264
        %p702 = scmp.lt.s32.totalorder %s32, 1
        %s703 = scalar_select %p702, %s32, 1
        %s704 = smul.addr %s703, 8
        %s705 = smul.addr %s704, 4
        %s706 = scalar_lea.vmem %s10, %s705
        %p707 = pneg %p293
        %p708 = pneg %p290
        %p709 = scmp.lt.s32.totalorder %s32, 1
        %s710 = scalar_select %p709, %s32, 1
        %s711 = scalar_lea.vmem %s11, %s710
        %p712 = pneg %p319
        %p713 = pneg %p316
        %p714 = scmp.lt.s32.totalorder %s32, 1
        %s715 = scalar_select %p714, %s32, 1
        %s716 = smul.addr %s715, 16
        %s717 = smul.addr %s716, 4
        %s718 = scalar_lea.vmem %s12, %s717
        %p719 = pneg %p345
        %p720 = pneg %p342
        %p721 = scmp.lt.s32.totalorder %s32, 1
        %s722 = scalar_select %p721, %s32, 1
        %s723 = scalar_lea.vmem %s13, %s722
        %p724 = pneg %p371
        %p725 = pneg %p368
        %p726 = scmp.lt.s32.totalorder %s32, 1
        %s727 = scalar_select %p726, %s32, 1
        %s728 = scalar_lea.vmem %s14, %s727
        %p729 = pneg %p397
        %p730 = pneg %p394
        %p731 = scmp.lt.s32.totalorder %s32, 1
        %s732 = scalar_select %p731, %s32, 1
        %s733 = scalar_lea.vmem %s15, %s732
        %p734 = pneg %p423
        %p735 = pneg %p420
        %p736 = pneg %p444
        %p737 = pneg %p441
        %p738 = pneg %p465
        %p739 = pneg %p462
        %p740 = pneg %p486
        %p741 = pneg %p483
        %p742 = pneg %p507
        %p743 = pneg %p504
        %p744 = pneg %p528
        %p745 = pneg %p525
        %p746 = scmp.lt.s32.totalorder %s32, 1
        %s747 = scalar_select %p746, %s32, 1
        %s748 = smul.addr %s747, 16
        %s749 = smul.addr %s748, 4
        %s750 = scalar_lea.vmem %s4, %s749
        %p751 = scmp.lt.s32.totalorder %s32, 1
        %s752 = scalar_select %p751, %s32, 1
        %s753 = smul.addr %s752, 2
        %s754 = scalar_lea.vmem %s5, %s753
        %p755 = scmp.lt.s32.totalorder %s32, 1
        %s756 = scalar_select %p755, %s32, 1
        %s757 = smul.addr %s756, 8
        %s758 = smul.addr %s757, 4
        %s759 = scalar_lea.vmem %s6, %s758
        %p760 = scmp.lt.s32.totalorder %s32, 1
        %s761 = scalar_select %p760, %s32, 1
        %s762 = scalar_lea.vmem %s7, %s761
        %p763 = scmp.lt.s32.totalorder %s32, 1
        %s764 = scalar_select %p763, %s32, 1
        %s765 = scalar_lea.vmem %s8, %s764
        %p766 = scmp.lt.s32.totalorder %s32, 1
        %s767 = scalar_select %p766, %s32, 1
        %s768 = scalar_lea.vmem %s9, %s767
        %p769 = scmp.lt.s32.totalorder %s32, 1
        %s770 = scalar_select %p769, %s32, 1
        %s771 = smul.addr %s770, 8
        %s772 = smul.addr %s771, 4
        %s773 = scalar_lea.vmem %s10, %s772
        %p774 = scmp.lt.s32.totalorder %s32, 1
        %s775 = scalar_select %p774, %s32, 1
        %s776 = scalar_lea.vmem %s11, %s775
        %p777 = scmp.lt.s32.totalorder %s32, 1
        %s778 = scalar_select %p777, %s32, 1
        %s779 = smul.addr %s778, 16
        %s780 = smul.addr %s779, 4
        %s781 = scalar_lea.vmem %s12, %s780
        %p782 = scmp.lt.s32.totalorder %s32, 1
        %s783 = scalar_select %p782, %s32, 1
        %s784 = scalar_lea.vmem %s13, %s783
        %p785 = scmp.lt.s32.totalorder %s32, 1
        %s786 = scalar_select %p785, %s32, 1
        %s787 = scalar_lea.vmem %s14, %s786
        %p788 = scmp.lt.s32.totalorder %s32, 1
        %s789 = scalar_select %p788, %s32, 1
        %s790 = scalar_lea.vmem %s15, %s789
        %p792 = scmp.eq.s32.totalorder %s32, 0
        // Predicated region
        $region101: #{distilbert_class_forward.1} parent=99 // pred_check
          %p793 = pneg %p792
        $region102: #{distilbert_class_forward.1} parent=99 // pred_check_branch
          %795 = sbr.rel (%p793) target = $region104
        $region103: #{distilbert_class_forward.1} parent=99 // pred_region
          %v796 = vld [vmem:[%s0] sm:$0xff]
          %v797 = vld [vmem:[%s0 + $0x8] sm:$0xff]
          %v798 = vld [vmem:[%s2] sm:$0x1]
          %v799 = vld [vmem:[%s3] sm:$0x1]
          %vm800 = vcmask 523264
          %v801 = vsel %vm800, %v796, 0.0
          %802 = vadd.xlane.f32.xlu0 %v801
          %v803 = vpop.xlane.xlu0 %802
          %v804 = vsel %vm800, %v797, 0.0
          %805 = vadd.xlane.f32.xlu0 %v804
          %v806 = vpop.xlane.xlu0 %805
          %v807 = vrcp.pop 64.0
          %v808 = vmul.f32 64.0, %v807
          %v809 = vsub.f32 1.0, %v808
          %v810 = vmul.f32 %v807, %v809
          %v811 = vadd.f32 %v807, %v810
          %vm812 = vweird.f32 %v807
          %v813 = vsel %vm812, %v807, %v811
          %v814 = vmul.f32 %v803, %v813
          %v815 = vmul.f32 %v806, %v813
          %v816 = vsub.f32 %v796, %v814
          %v817 = vsub.f32 %v797, %v815
          %v818 = vmul.f32 %v816, %v816
          %v819 = vmul.f32 %v817, %v817
          %v820 = vsel %vm800, %v818, 0.0
          %821 = vadd.xlane.f32.xlu0 %v820
          %v822 = vpop.xlane.xlu0 %821
          %v823 = vsel %vm800, %v819, 0.0
          %824 = vadd.xlane.f32.xlu0 %v823
          %v825 = vpop.xlane.xlu0 %824
          %v826 = vmul.f32 %v822, %v813
          %v827 = vmul.f32 %v825, %v813
          %v828 = vadd.f32 %v826, 1e-12
          %v829 = vadd.f32 %v827, 1e-12
          %v830 = vrsqrt.pop %v828
          %v831 = vmul.f32 %v830, %v828
          %v832 = vmul.f32 %v831, %v830
          %v833 = vmul.f32 0.5, %v832
          %v834 = vsub.f32 1.5, %v833
          %v835 = vmul.f32 %v830, %v834
          %vm836 = vweird.f32 %v828
          %vm837 = vweird.f32 %v830
          %vm838 = vmor %vm836, %vm837
          %v839 = vsel %vm838, %v830, %v835
          %v840 = vrsqrt.pop %v829
          %v841 = vmul.f32 %v840, %v829
          %v842 = vmul.f32 %v841, %v840
          %v843 = vmul.f32 0.5, %v842
          %v844 = vsub.f32 1.5, %v843
          %v845 = vmul.f32 %v840, %v844
          %vm846 = vweird.f32 %v829
          %vm847 = vweird.f32 %v840
          %vm848 = vmor %vm846, %vm847
          %v849 = vsel %vm848, %v840, %v845
          %v850 = vmul.f32 %v816, %v839
          %v851 = vmul.f32 %v817, %v849
          %v853 = vperm.slane %v798, 0
          %v855 = vmul.f32 %v850, %v853
          %v856 = vmul.f32 %v851, %v853
          %v858 = vperm.slane %v799, 0
          %v860 = vadd.f32 %v855, %v858
          %v861 = vadd.f32 %v856, %v858
          %862 = vst.msk [vmem:[#allocation2] sm:$0xff] %vm800, %v860
          %863 = vst.msk [vmem:[#allocation2 + $0x8] sm:$0xff] %vm800, %v861
          %864 = vst [vmem:[#allocation3] sm:$0x3] 0.0
        $region104: #{distilbert_class_forward.1} parent=99 // pred_fallthru
          _
        %v865 = vld [vmem:[#allocation2] sm:$0xff]
        %v866 = vld [vmem:[#allocation2 + $0x8] sm:$0xff]
        %v867 = vld [vmem:[%s754] sm:$0x3]
        %v868 = vpack.c.bf16 %v866, %v865
        %v869 = vld [vmem:[%s750] sm:$0xff]
        %v870 = vld [vmem:[%s750 + $0x8] sm:$0xff]
        %v871 = vld [vmem:[%s750 + $0x10] sm:$0xff]
        %v872 = vld [vmem:[%s750 + $0x18] sm:$0xff]
        %v873 = vld [vmem:[%s750 + $0x20] sm:$0xff]
        %v874 = vld [vmem:[%s750 + $0x28] sm:$0xff]
        %v875 = vld [vmem:[%s750 + $0x30] sm:$0xff]
        %v876 = vld [vmem:[%s750 + $0x38] sm:$0xff]
        %v878 = vperm.slane %v867, 0
        %v879 = vperm.slane %v867, 1
        %v890 = vunpack.c.l.b16 %v869
        %v891 = vunpack.c.h.b16 %v869
        %v892 = vunpack.c.l.b16 %v870
        %v893 = vunpack.c.h.b16 %v870
        %v894 = vunpack.c.l.b16 %v871
        %v895 = vunpack.c.h.b16 %v871
        %v896 = vunpack.c.l.b16 %v872
        %v897 = vunpack.c.h.b16 %v872
        %v898 = vunpack.c.l.b16 %v873
        %v899 = vunpack.c.h.b16 %v873
        %v900 = vunpack.c.l.b16 %v874
        %v901 = vunpack.c.h.b16 %v874
        %v902 = vunpack.c.l.b16 %v875
        %v903 = vunpack.c.h.b16 %v875
        %v904 = vunpack.c.l.b16 %v876
        %v905 = vunpack.c.h.b16 %v876
        %v906 = vpack.c.b16 %v892, %v890
        %v907 = vpack.c.b16 %v893, %v891
        %v908 = vpack.c.b16 %v896, %v894
        %v909 = vpack.c.b16 %v897, %v895
        %v910 = vpack.c.b16 %v900, %v898
        %v911 = vpack.c.b16 %v901, %v899
        %v912 = vpack.c.b16 %v904, %v902
        %v913 = vpack.c.b16 %v905, %v903
        %vm922 = vcmask 523264
        %v924 = vsel %vm922, %v868, 0
        %926 = vmatpush.bf16.msra.mxu0 0
        %927 = vmatpush.bf16.msra.mxu0 0
        %928 = vmatpush.bf16.msra.mxu0 0
        %929 = vmatpush.bf16.msra.mxu0 0
        %930 = vmatpush.bf16.msra.mxu0 %v912
        %931 = vmatpush.bf16.msra.mxu0 %v910
        %932 = vmatpush.bf16.msra.mxu0 %v908
        %933 = vmatpush.bf16.msra.mxu0 %v906
        %934 = vmatmul.bf16.gmra.mxu0 %v924
        %v935 = vpop.f32.mrf.mxu0
        %v936 = vadd.f32 %v878, %v935
        %v937 = vpop.f32.mrf.mxu0
        %v938 = vadd.f32 %v878, %v937
        %939 = vdwg.mxu0
        %940 = vmatpush.bf16.msra.mxu0 0
        %941 = vmatpush.bf16.msra.mxu0 0
        %942 = vmatpush.bf16.msra.mxu0 0
        %943 = vmatpush.bf16.msra.mxu0 0
        %944 = vmatpush.bf16.msra.mxu0 %v913
        %945 = vmatpush.bf16.msra.mxu0 %v911
        %946 = vmatpush.bf16.msra.mxu0 %v909
        %947 = vmatpush.bf16.msra.mxu0 %v907
        %948 = vmatmul.bf16.gmra.mxu0 %v924
        %v949 = vpop.f32.mrf.mxu0
        %v950 = vadd.f32 %v879, %v949
        %v951 = vpop.f32.mrf.mxu0
        %v952 = vadd.f32 %v879, %v951
        %953 = vdwg.mxu0
        %956 = vrot.lane.b32.xlu0 %v936, 112
        %v957 = vpop.permute.xlu0 %956
        %958 = vrot.lane.b32.xlu0 %v938, 112
        %v959 = vpop.permute.xlu0 %958
        %962 = vrot.lane.b32.xlu0 %v936, 96
        %v963 = vpop.permute.xlu0 %962
        %964 = vrot.lane.b32.xlu0 %v938, 96
        %v965 = vpop.permute.xlu0 %964
        %968 = vrot.lane.b32.xlu0 %v936, 80
        %v969 = vpop.permute.xlu0 %968
        %970 = vrot.lane.b32.xlu0 %v938, 80
        %v971 = vpop.permute.xlu0 %970
        %v974 = vpack.c.bf16 %v936, %v936
        %v975 = vpack.c.bf16 %v938, %v938
        %v976 = vpack.c.bf16 %v957, %v957
        %v977 = vpack.c.bf16 %v959, %v959
        %v978 = vpack.c.bf16 %v963, %v963
        %v979 = vpack.c.bf16 %v965, %v965
        %v980 = vpack.c.bf16 %v969, %v969
        %v981 = vpack.c.bf16 %v971, %v971
        %984 = vrot.lane.b32.xlu0 %v950, 112
        %v985 = vpop.permute.xlu0 %984
        %986 = vrot.lane.b32.xlu0 %v952, 112
        %v987 = vpop.permute.xlu0 %986
        %990 = vrot.lane.b32.xlu0 %v950, 96
        %v991 = vpop.permute.xlu0 %990
        %992 = vrot.lane.b32.xlu0 %v952, 96
        %v993 = vpop.permute.xlu0 %992
        %996 = vrot.lane.b32.xlu0 %v950, 80
        %v997 = vpop.permute.xlu0 %996
        %998 = vrot.lane.b32.xlu0 %v952, 80
        %v999 = vpop.permute.xlu0 %998
        %v1002 = vpack.c.bf16 %v950, %v950
        %v1003 = vpack.c.bf16 %v952, %v952
        %v1004 = vpack.c.bf16 %v985, %v985
        %v1005 = vpack.c.bf16 %v987, %v987
        %v1006 = vpack.c.bf16 %v991, %v991
        %v1007 = vpack.c.bf16 %v993, %v993
        %v1008 = vpack.c.bf16 %v997, %v997
        %v1009 = vpack.c.bf16 %v999, %v999
        %v1011 = vunpack.c.l.b16 %v974
        %v1012 = vpack.c.b16 %v1011, %v1011
        %1013 = vrot.lane.b32.xlu0 %v1012, 64
        %v1014 = vpop.permute.xlu0 %1013
        %vm1015 = vcmask 130048
        %v1017 = vsel %vm1015, %v974, 0
        %v1020 = vsel %vm1015, %v1014, 0
        %1022 = vmatpush.bf16.xpose.msra.mxu0 0
        %1023 = vmatpush.bf16.xpose.msra.mxu0 0
        %1024 = vmatpush.bf16.xpose.msra.mxu0 0
        %1025 = vmatpush.bf16.xpose.msra.mxu0 0
        %1026 = vmatpush.bf16.xpose.msra.mxu0 0
        %1027 = vmatpush.bf16.xpose.msra.mxu0 0
        %1028 = vmatpush.bf16.xpose.msra.mxu0 0
        %1029 = vmatpush.bf16.xpose.msra.mxu0 %v1020
        %1030 = vmatmul.bf16.gmra.mxu0 %v1017
        %v1031 = vpop.f32.mrf.mxu0
        %v1032 = vadd.f32 0.0, %v1031
        %v1033 = vpop.f32.mrf.mxu0
        %1034 = vdwg.mxu0
        %v1036 = vunpack.c.l.b16 %v975
        %v1037 = vpack.c.b16 %v1036, %v1036
        %1038 = vrot.lane.b32.xlu0 %v1037, 64
        %v1039 = vpop.permute.xlu0 %1038
        %v1041 = vsel %vm1015, %v975, 0
        %v1044 = vsel %vm1015, %v1039, 0
        %1046 = vmatpush.bf16.xpose.msra.mxu0 0
        %1047 = vmatpush.bf16.xpose.msra.mxu0 0
        %1048 = vmatpush.bf16.xpose.msra.mxu0 0
        %1049 = vmatpush.bf16.xpose.msra.mxu0 0
        %1050 = vmatpush.bf16.xpose.msra.mxu0 0
        %1051 = vmatpush.bf16.xpose.msra.mxu0 0
        %1052 = vmatpush.bf16.xpose.msra.mxu0 0
        %1053 = vmatpush.bf16.xpose.msra.mxu0 %v1044
        %1054 = vmatmul.bf16.gmra.mxu0 %v1041
        %v1055 = vpop.f32.mrf.mxu0
        %v1056 = vadd.f32 0.0, %v1055
        %v1057 = vpop.f32.mrf.mxu0
        %1058 = vdwg.mxu0
        %v1060 = vunpack.c.l.b16 %v976
        %v1061 = vpack.c.b16 %v1060, %v1060
        %1062 = vrot.lane.b32.xlu0 %v1061, 64
        %v1063 = vpop.permute.xlu0 %1062
        %v1065 = vsel %vm1015, %v976, 0
        %v1068 = vsel %vm1015, %v1063, 0
        %1070 = vmatpush.bf16.xpose.msra.mxu0 0
        %1071 = vmatpush.bf16.xpose.msra.mxu0 0
        %1072 = vmatpush.bf16.xpose.msra.mxu0 0
        %1073 = vmatpush.bf16.xpose.msra.mxu0 0
        %1074 = vmatpush.bf16.xpose.msra.mxu0 0
        %1075 = vmatpush.bf16.xpose.msra.mxu0 0
        %1076 = vmatpush.bf16.xpose.msra.mxu0 0
        %1077 = vmatpush.bf16.xpose.msra.mxu0 %v1068
        %1078 = vmatmul.bf16.gmra.mxu0 %v1065
        %v1079 = vpop.f32.mrf.mxu0
        %v1080 = vadd.f32 0.0, %v1079
        %v1081 = vpop.f32.mrf.mxu0
        %1082 = vdwg.mxu0
        %v1084 = vunpack.c.l.b16 %v977
        %v1085 = vpack.c.b16 %v1084, %v1084
        %1086 = vrot.lane.b32.xlu0 %v1085, 64
        %v1087 = vpop.permute.xlu0 %1086
        %v1089 = vsel %vm1015, %v977, 0
        %v1092 = vsel %vm1015, %v1087, 0
        %1094 = vmatpush.bf16.xpose.msra.mxu0 0
        %1095 = vmatpush.bf16.xpose.msra.mxu0 0
        %1096 = vmatpush.bf16.xpose.msra.mxu0 0
        %1097 = vmatpush.bf16.xpose.msra.mxu0 0
        %1098 = vmatpush.bf16.xpose.msra.mxu0 0
        %1099 = vmatpush.bf16.xpose.msra.mxu0 0
        %1100 = vmatpush.bf16.xpose.msra.mxu0 0
        %1101 = vmatpush.bf16.xpose.msra.mxu0 %v1092
        %1102 = vmatmul.bf16.gmra.mxu0 %v1089
        %v1103 = vpop.f32.mrf.mxu0
        %v1104 = vadd.f32 0.0, %v1103
        %v1105 = vpop.f32.mrf.mxu0
        %1106 = vdwg.mxu0
        %v1108 = vunpack.c.l.b16 %v978
        %v1109 = vpack.c.b16 %v1108, %v1108
        %1110 = vrot.lane.b32.xlu0 %v1109, 64
        %v1111 = vpop.permute.xlu0 %1110
        %v1113 = vsel %vm1015, %v978, 0
        %v1116 = vsel %vm1015, %v1111, 0
        %1118 = vmatpush.bf16.xpose.msra.mxu0 0
        %1119 = vmatpush.bf16.xpose.msra.mxu0 0
        %1120 = vmatpush.bf16.xpose.msra.mxu0 0
        %1121 = vmatpush.bf16.xpose.msra.mxu0 0
        %1122 = vmatpush.bf16.xpose.msra.mxu0 0
        %1123 = vmatpush.bf16.xpose.msra.mxu0 0
        %1124 = vmatpush.bf16.xpose.msra.mxu0 0
        %1125 = vmatpush.bf16.xpose.msra.mxu0 %v1116
        %1126 = vmatmul.bf16.gmra.mxu0 %v1113
        %v1127 = vpop.f32.mrf.mxu0
        %v1128 = vadd.f32 0.0, %v1127
        %v1129 = vpop.f32.mrf.mxu0
        %1130 = vdwg.mxu0
        %v1132 = vunpack.c.l.b16 %v979
        %v1133 = vpack.c.b16 %v1132, %v1132
        %1134 = vrot.lane.b32.xlu0 %v1133, 64
        %v1135 = vpop.permute.xlu0 %1134
        %v1137 = vsel %vm1015, %v979, 0
        %v1140 = vsel %vm1015, %v1135, 0
        %1142 = vmatpush.bf16.xpose.msra.mxu0 0
        %1143 = vmatpush.bf16.xpose.msra.mxu0 0
        %1144 = vmatpush.bf16.xpose.msra.mxu0 0
        %1145 = vmatpush.bf16.xpose.msra.mxu0 0
        %1146 = vmatpush.bf16.xpose.msra.mxu0 0
        %1147 = vmatpush.bf16.xpose.msra.mxu0 0
        %1148 = vmatpush.bf16.xpose.msra.mxu0 0
        %1149 = vmatpush.bf16.xpose.msra.mxu0 %v1140
        %1150 = vmatmul.bf16.gmra.mxu0 %v1137
        %v1151 = vpop.f32.mrf.mxu0
        %v1152 = vadd.f32 0.0, %v1151
        %v1153 = vpop.f32.mrf.mxu0
        %1154 = vdwg.mxu0
        %v1156 = vunpack.c.l.b16 %v980
        %v1157 = vpack.c.b16 %v1156, %v1156
        %1158 = vrot.lane.b32.xlu0 %v1157, 64
        %v1159 = vpop.permute.xlu0 %1158
        %v1161 = vsel %vm1015, %v980, 0
        %v1164 = vsel %vm1015, %v1159, 0
        %1166 = vmatpush.bf16.xpose.msra.mxu0 0
        %1167 = vmatpush.bf16.xpose.msra.mxu0 0
        %1168 = vmatpush.bf16.xpose.msra.mxu0 0
        %1169 = vmatpush.bf16.xpose.msra.mxu0 0
        %1170 = vmatpush.bf16.xpose.msra.mxu0 0
        %1171 = vmatpush.bf16.xpose.msra.mxu0 0
        %1172 = vmatpush.bf16.xpose.msra.mxu0 0
        %1173 = vmatpush.bf16.xpose.msra.mxu0 %v1164
        %1174 = vmatmul.bf16.gmra.mxu0 %v1161
        %v1175 = vpop.f32.mrf.mxu0
        %v1176 = vadd.f32 0.0, %v1175
        %v1177 = vpop.f32.mrf.mxu0
        %1178 = vdwg.mxu0
        %v1180 = vunpack.c.l.b16 %v981
        %v1181 = vpack.c.b16 %v1180, %v1180
        %1182 = vrot.lane.b32.xlu0 %v1181, 64
        %v1183 = vpop.permute.xlu0 %1182
        %v1185 = vsel %vm1015, %v981, 0
        %v1188 = vsel %vm1015, %v1183, 0
        %1190 = vmatpush.bf16.xpose.msra.mxu0 0
        %1191 = vmatpush.bf16.xpose.msra.mxu0 0
        %1192 = vmatpush.bf16.xpose.msra.mxu0 0
        %1193 = vmatpush.bf16.xpose.msra.mxu0 0
        %1194 = vmatpush.bf16.xpose.msra.mxu0 0
        %1195 = vmatpush.bf16.xpose.msra.mxu0 0
        %1196 = vmatpush.bf16.xpose.msra.mxu0 0
        %1197 = vmatpush.bf16.xpose.msra.mxu0 %v1188
        %1198 = vmatmul.bf16.gmra.mxu0 %v1185
        %v1199 = vpop.f32.mrf.mxu0
        %v1200 = vadd.f32 0.0, %v1199
        %v1201 = vpop.f32.mrf.mxu0
        %1202 = vdwg.mxu0
        %v1203 = vld [vmem:[%s1] sm:$0x1]
        %v1204 = vld [vmem:[%s1 + $0x1] sm:$0x1]
        %vm1205 = vcmp.eq.f32.partialorder %v1203, 0.0
        %vm1206 = vcmp.eq.f32.partialorder %v1204, 0.0
        %v1207 = vsel %vm1205, -1e+09, 0.0
        %v1208 = vsel %vm1206, -1e+09, 0.0
        %v1211 = vperm.slane %v1207, 0
        %v1212 = vperm.slane %v1208, 0
        %v1215 = vadd.f32 %v1032, %v1211
        %v1216 = vadd.f32 %v1056, %v1212
        %v1217 = vadd.f32 %v1080, %v1211
        %v1218 = vadd.f32 %v1104, %v1212
        %v1219 = vadd.f32 %v1128, %v1211
        %v1220 = vadd.f32 %v1152, %v1212
        %v1221 = vadd.f32 %v1176, %v1211
        %v1222 = vadd.f32 %v1200, %v1212
        %vm1223 = vcmask 64512
        %v1224 = vsel %vm1223, %v1215, -inf
        %1225 = vmax.xlane.f32.xlu0 %v1224
        %v1226 = vpop.xlane.xlu0 %1225
        %v1227 = vsel %vm1223, %v1216, -inf
        %1228 = vmax.xlane.f32.xlu0 %v1227
        %v1229 = vpop.xlane.xlu0 %1228
        %v1230 = vsel %vm1223, %v1217, -inf
        %1231 = vmax.xlane.f32.xlu0 %v1230
        %v1232 = vpop.xlane.xlu0 %1231
        %v1233 = vsel %vm1223, %v1218, -inf
        %1234 = vmax.xlane.f32.xlu0 %v1233
        %v1235 = vpop.xlane.xlu0 %1234
        %v1236 = vsel %vm1223, %v1219, -inf
        %1237 = vmax.xlane.f32.xlu0 %v1236
        %v1238 = vpop.xlane.xlu0 %1237
        %v1239 = vsel %vm1223, %v1220, -inf
        %1240 = vmax.xlane.f32.xlu0 %v1239
        %v1241 = vpop.xlane.xlu0 %1240
        %v1242 = vsel %vm1223, %v1221, -inf
        %1243 = vmax.xlane.f32.xlu0 %v1242
        %v1244 = vpop.xlane.xlu0 %1243
        %v1245 = vsel %vm1223, %v1222, -inf
        %1246 = vmax.xlane.f32.xlu0 %v1245
        %v1247 = vpop.xlane.xlu0 %1246
        %v1248 = vsub.f32 %v1215, %v1226
        %v1249 = vsub.f32 %v1216, %v1229
        %v1250 = vsub.f32 %v1217, %v1232
        %v1251 = vsub.f32 %v1218, %v1235
        %v1252 = vsub.f32 %v1219, %v1238
        %v1253 = vsub.f32 %v1220, %v1241
        %v1254 = vsub.f32 %v1221, %v1244
        %v1255 = vsub.f32 %v1222, %v1247
        %v1256 = vmul.f32 %v1248, 1.442695
        %v1257 = vpow.pop %v1256
        %v1258 = vmul.f32 %v1249, 1.442695
        %v1259 = vpow.pop %v1258
        %v1260 = vmul.f32 %v1250, 1.442695
        %v1261 = vpow.pop %v1260
        %v1262 = vmul.f32 %v1251, 1.442695
        %v1263 = vpow.pop %v1262
        %v1264 = vmul.f32 %v1252, 1.442695
        %v1265 = vpow.pop %v1264
        %v1266 = vmul.f32 %v1253, 1.442695
        %v1267 = vpow.pop %v1266
        %v1268 = vmul.f32 %v1254, 1.442695
        %v1269 = vpow.pop %v1268
        %v1270 = vmul.f32 %v1255, 1.442695
        %v1271 = vpow.pop %v1270
        %v1272 = vsel %vm1223, %v1257, 0.0
        %1273 = vadd.xlane.f32.xlu0 %v1272
        %v1274 = vpop.xlane.xlu0 %1273
        %v1275 = vsel %vm1223, %v1259, 0.0
        %1276 = vadd.xlane.f32.xlu0 %v1275
        %v1277 = vpop.xlane.xlu0 %1276
        %v1278 = vsel %vm1223, %v1261, 0.0
        %1279 = vadd.xlane.f32.xlu0 %v1278
        %v1280 = vpop.xlane.xlu0 %1279
        %v1281 = vsel %vm1223, %v1263, 0.0
        %1282 = vadd.xlane.f32.xlu0 %v1281
        %v1283 = vpop.xlane.xlu0 %1282
        %v1284 = vsel %vm1223, %v1265, 0.0
        %1285 = vadd.xlane.f32.xlu0 %v1284
        %v1286 = vpop.xlane.xlu0 %1285
        %v1287 = vsel %vm1223, %v1267, 0.0
        %1288 = vadd.xlane.f32.xlu0 %v1287
        %v1289 = vpop.xlane.xlu0 %1288
        %v1290 = vsel %vm1223, %v1269, 0.0
        %1291 = vadd.xlane.f32.xlu0 %v1290
        %v1292 = vpop.xlane.xlu0 %1291
        %v1293 = vsel %vm1223, %v1271, 0.0
        %1294 = vadd.xlane.f32.xlu0 %v1293
        %v1295 = vpop.xlane.xlu0 %1294
        %v1296 = vrcp.pop %v1274
        %v1297 = vmul.f32 %v1274, %v1296
        %v1298 = vsub.f32 1.0, %v1297
        %v1299 = vmul.f32 %v1296, %v1298
        %v1300 = vadd.f32 %v1296, %v1299
        %vm1301 = vweird.f32 %v1274
        %vm1302 = vweird.f32 %v1296
        %vm1303 = vmor %vm1301, %vm1302
        %v1304 = vsel %vm1303, %v1296, %v1300
        %v1305 = vand.u32 2147483647, %v1274
        %vm1306 = vcmp.eq.f32.partialorder %v1305, 8.507059e+37
        %v1307 = vand.u32 %v1274, 2147483648
        %v1308 = vor.u32 1.1754944e-38, %v1307
        %v1309 = vsel %vm1306, %v1308, %v1304
        %v1310 = vmul.f32 %v1257, %v1309
        %v1311 = vrcp.pop %v1277
        %v1312 = vmul.f32 %v1277, %v1311
        %v1313 = vsub.f32 1.0, %v1312
        %v1314 = vmul.f32 %v1311, %v1313
        %v1315 = vadd.f32 %v1311, %v1314
        %vm1316 = vweird.f32 %v1277
        %vm1317 = vweird.f32 %v1311
        %vm1318 = vmor %vm1316, %vm1317
        %v1319 = vsel %vm1318, %v1311, %v1315
        %v1320 = vand.u32 2147483647, %v1277
        %vm1321 = vcmp.eq.f32.partialorder %v1320, 8.507059e+37
        %v1322 = vand.u32 %v1277, 2147483648
        %v1323 = vor.u32 1.1754944e-38, %v1322
        %v1324 = vsel %vm1321, %v1323, %v1319
        %v1325 = vmul.f32 %v1259, %v1324
        %v1326 = vrcp.pop %v1280
        %v1327 = vmul.f32 %v1280, %v1326
        %v1328 = vsub.f32 1.0, %v1327
        %v1329 = vmul.f32 %v1326, %v1328
        %v1330 = vadd.f32 %v1326, %v1329
        %vm1331 = vweird.f32 %v1280
        %vm1332 = vweird.f32 %v1326
        %vm1333 = vmor %vm1331, %vm1332
        %v1334 = vsel %vm1333, %v1326, %v1330
        %v1335 = vand.u32 2147483647, %v1280
        %vm1336 = vcmp.eq.f32.partialorder %v1335, 8.507059e+37
        %v1337 = vand.u32 %v1280, 2147483648
        %v1338 = vor.u32 1.1754944e-38, %v1337
        %v1339 = vsel %vm1336, %v1338, %v1334
        %v1340 = vmul.f32 %v1261, %v1339
        %v1341 = vrcp.pop %v1283
        %v1342 = vmul.f32 %v1283, %v1341
        %v1343 = vsub.f32 1.0, %v1342
        %v1344 = vmul.f32 %v1341, %v1343
        %v1345 = vadd.f32 %v1341, %v1344
        %vm1346 = vweird.f32 %v1283
        %vm1347 = vweird.f32 %v1341
        %vm1348 = vmor %vm1346, %vm1347
        %v1349 = vsel %vm1348, %v1341, %v1345
        %v1350 = vand.u32 2147483647, %v1283
        %vm1351 = vcmp.eq.f32.partialorder %v1350, 8.507059e+37
        %v1352 = vand.u32 %v1283, 2147483648
        %v1353 = vor.u32 1.1754944e-38, %v1352
        %v1354 = vsel %vm1351, %v1353, %v1349
        %v1355 = vmul.f32 %v1263, %v1354
        %v1356 = vrcp.pop %v1286
        %v1357 = vmul.f32 %v1286, %v1356
        %v1358 = vsub.f32 1.0, %v1357
        %v1359 = vmul.f32 %v1356, %v1358
        %v1360 = vadd.f32 %v1356, %v1359
        %vm1361 = vweird.f32 %v1286
        %vm1362 = vweird.f32 %v1356
        %vm1363 = vmor %vm1361, %vm1362
        %v1364 = vsel %vm1363, %v1356, %v1360
        %v1365 = vand.u32 2147483647, %v1286
        %vm1366 = vcmp.eq.f32.partialorder %v1365, 8.507059e+37
        %v1367 = vand.u32 %v1286, 2147483648
        %v1368 = vor.u32 1.1754944e-38, %v1367
        %v1369 = vsel %vm1366, %v1368, %v1364
        %v1370 = vmul.f32 %v1265, %v1369
        %v1371 = vrcp.pop %v1289
        %v1372 = vmul.f32 %v1289, %v1371
        %v1373 = vsub.f32 1.0, %v1372
        %v1374 = vmul.f32 %v1371, %v1373
        %v1375 = vadd.f32 %v1371, %v1374
        %vm1376 = vweird.f32 %v1289
        %vm1377 = vweird.f32 %v1371
        %vm1378 = vmor %vm1376, %vm1377
        %v1379 = vsel %vm1378, %v1371, %v1375
        %v1380 = vand.u32 2147483647, %v1289
        %vm1381 = vcmp.eq.f32.partialorder %v1380, 8.507059e+37
        %v1382 = vand.u32 %v1289, 2147483648
        %v1383 = vor.u32 1.1754944e-38, %v1382
        %v1384 = vsel %vm1381, %v1383, %v1379
        %v1385 = vmul.f32 %v1267, %v1384
        %v1386 = vrcp.pop %v1292
        %v1387 = vmul.f32 %v1292, %v1386
        %v1388 = vsub.f32 1.0, %v1387
        %v1389 = vmul.f32 %v1386, %v1388
        %v1390 = vadd.f32 %v1386, %v1389
        %vm1391 = vweird.f32 %v1292
        %vm1392 = vweird.f32 %v1386
        %vm1393 = vmor %vm1391, %vm1392
        %v1394 = vsel %vm1393, %v1386, %v1390
        %v1395 = vand.u32 2147483647, %v1292
        %vm1396 = vcmp.eq.f32.partialorder %v1395, 8.507059e+37
        %v1397 = vand.u32 %v1292, 2147483648
        %v1398 = vor.u32 1.1754944e-38, %v1397
        %v1399 = vsel %vm1396, %v1398, %v1394
        %v1400 = vmul.f32 %v1269, %v1399
        %v1401 = vrcp.pop %v1295
        %v1402 = vmul.f32 %v1295, %v1401
        %v1403 = vsub.f32 1.0, %v1402
        %v1404 = vmul.f32 %v1401, %v1403
        %v1405 = vadd.f32 %v1401, %v1404
        %vm1406 = vweird.f32 %v1295
        %vm1407 = vweird.f32 %v1401
        %vm1408 = vmor %vm1406, %vm1407
        %v1409 = vsel %vm1408, %v1401, %v1405
        %v1410 = vand.u32 2147483647, %v1295
        %vm1411 = vcmp.eq.f32.partialorder %v1410, 8.507059e+37
        %v1412 = vand.u32 %v1295, 2147483648
        %v1413 = vor.u32 1.1754944e-38, %v1412
        %v1414 = vsel %vm1411, %v1413, %v1409
        %v1415 = vmul.f32 %v1271, %v1414
        %v1416 = vpack.c.bf16 %v1310, %v1310
        %v1417 = vpack.c.bf16 %v1325, %v1325
        %v1418 = vpack.c.bf16 %v1340, %v1340
        %v1419 = vpack.c.bf16 %v1355, %v1355
        %v1420 = vpack.c.bf16 %v1370, %v1370
        %v1421 = vpack.c.bf16 %v1385, %v1385
        %v1422 = vpack.c.bf16 %v1400, %v1400
        %v1423 = vpack.c.bf16 %v1415, %v1415
        %v1425 = vsel %vm1223, %v1416, 0
        %vm1427 = vcmask 1043456
        %v1429 = vsel %vm1427, %v1002, 0
        %1431 = vmatpush.bf16.msra.mxu0 0
        %1432 = vmatpush.bf16.msra.mxu0 0
        %1433 = vmatpush.bf16.msra.mxu0 0
        %1434 = vmatpush.bf16.msra.mxu0 0
        %1435 = vmatpush.bf16.msra.mxu0 0
        %1436 = vmatpush.bf16.msra.mxu0 0
        %1437 = vmatpush.bf16.msra.mxu0 0
        %1438 = vmatpush.bf16.msra.mxu0 %v1429
        %1439 = vmatmul.bf16.gmra.mxu0 %v1425
        %v1440 = vpop.f32.mrf.mxu0
        %v1441 = vadd.f32 0.0, %v1440
        %v1442 = vpop.f32.mrf.mxu0
        %1443 = vdwg.mxu0
        %v1445 = vsel %vm1223, %v1417, 0
        %v1448 = vsel %vm1427, %v1003, 0
        %1450 = vmatpush.bf16.msra.mxu0 0
        %1451 = vmatpush.bf16.msra.mxu0 0
        %1452 = vmatpush.bf16.msra.mxu0 0
        %1453 = vmatpush.bf16.msra.mxu0 0
        %1454 = vmatpush.bf16.msra.mxu0 0
        %1455 = vmatpush.bf16.msra.mxu0 0
        %1456 = vmatpush.bf16.msra.mxu0 0
        %1457 = vmatpush.bf16.msra.mxu0 %v1448
        %1458 = vmatmul.bf16.gmra.mxu0 %v1445
        %v1459 = vpop.f32.mrf.mxu0
        %v1460 = vadd.f32 0.0, %v1459
        %v1461 = vpop.f32.mrf.mxu0
        %1462 = vdwg.mxu0
        %v1464 = vsel %vm1223, %v1418, 0
        %v1467 = vsel %vm1427, %v1004, 0
        %1469 = vmatpush.bf16.msra.mxu0 0
        %1470 = vmatpush.bf16.msra.mxu0 0
        %1471 = vmatpush.bf16.msra.mxu0 0
        %1472 = vmatpush.bf16.msra.mxu0 0
        %1473 = vmatpush.bf16.msra.mxu0 0
        %1474 = vmatpush.bf16.msra.mxu0 0
        %1475 = vmatpush.bf16.msra.mxu0 0
        %1476 = vmatpush.bf16.msra.mxu0 %v1467
        %1477 = vmatmul.bf16.gmra.mxu0 %v1464
        %v1478 = vpop.f32.mrf.mxu0
        %v1479 = vadd.f32 0.0, %v1478
        %v1480 = vpop.f32.mrf.mxu0
        %1481 = vdwg.mxu0
        %v1483 = vsel %vm1223, %v1419, 0
        %v1486 = vsel %vm1427, %v1005, 0
        %1488 = vmatpush.bf16.msra.mxu0 0
        %1489 = vmatpush.bf16.msra.mxu0 0
        %1490 = vmatpush.bf16.msra.mxu0 0
        %1491 = vmatpush.bf16.msra.mxu0 0
        %1492 = vmatpush.bf16.msra.mxu0 0
        %1493 = vmatpush.bf16.msra.mxu0 0
        %1494 = vmatpush.bf16.msra.mxu0 0
        %1495 = vmatpush.bf16.msra.mxu0 %v1486
        %1496 = vmatmul.bf16.gmra.mxu0 %v1483
        %v1497 = vpop.f32.mrf.mxu0
        %v1498 = vadd.f32 0.0, %v1497
        %v1499 = vpop.f32.mrf.mxu0
        %1500 = vdwg.mxu0
        %v1502 = vsel %vm1223, %v1420, 0
        %v1505 = vsel %vm1427, %v1006, 0
        %1507 = vmatpush.bf16.msra.mxu0 0
        %1508 = vmatpush.bf16.msra.mxu0 0
        %1509 = vmatpush.bf16.msra.mxu0 0
        %1510 = vmatpush.bf16.msra.mxu0 0
        %1511 = vmatpush.bf16.msra.mxu0 0
        %1512 = vmatpush.bf16.msra.mxu0 0
        %1513 = vmatpush.bf16.msra.mxu0 0
        %1514 = vmatpush.bf16.msra.mxu0 %v1505
        %1515 = vmatmul.bf16.gmra.mxu0 %v1502
        %v1516 = vpop.f32.mrf.mxu0
        %v1517 = vadd.f32 0.0, %v1516
        %v1518 = vpop.f32.mrf.mxu0
        %1519 = vdwg.mxu0
        %v1521 = vsel %vm1223, %v1421, 0
        %v1524 = vsel %vm1427, %v1007, 0
        %1526 = vmatpush.bf16.msra.mxu0 0
        %1527 = vmatpush.bf16.msra.mxu0 0
        %1528 = vmatpush.bf16.msra.mxu0 0
        %1529 = vmatpush.bf16.msra.mxu0 0
        %1530 = vmatpush.bf16.msra.mxu0 0
        %1531 = vmatpush.bf16.msra.mxu0 0
        %1532 = vmatpush.bf16.msra.mxu0 0
        %1533 = vmatpush.bf16.msra.mxu0 %v1524
        %1534 = vmatmul.bf16.gmra.mxu0 %v1521
        %v1535 = vpop.f32.mrf.mxu0
        %v1536 = vadd.f32 0.0, %v1535
        %v1537 = vpop.f32.mrf.mxu0
        %1538 = vdwg.mxu0
        %v1540 = vsel %vm1223, %v1422, 0
        %v1543 = vsel %vm1427, %v1008, 0
        %1545 = vmatpush.bf16.msra.mxu0 0
        %1546 = vmatpush.bf16.msra.mxu0 0
        %1547 = vmatpush.bf16.msra.mxu0 0
        %1548 = vmatpush.bf16.msra.mxu0 0
        %1549 = vmatpush.bf16.msra.mxu0 0
        %1550 = vmatpush.bf16.msra.mxu0 0
        %1551 = vmatpush.bf16.msra.mxu0 0
        %1552 = vmatpush.bf16.msra.mxu0 %v1543
        %1553 = vmatmul.bf16.gmra.mxu0 %v1540
        %v1554 = vpop.f32.mrf.mxu0
        %v1555 = vadd.f32 0.0, %v1554
        %v1556 = vpop.f32.mrf.mxu0
        %1557 = vdwg.mxu0
        %v1559 = vsel %vm1223, %v1423, 0
        %v1562 = vsel %vm1427, %v1009, 0
        %1564 = vmatpush.bf16.msra.mxu0 0
        %1565 = vmatpush.bf16.msra.mxu0 0
        %1566 = vmatpush.bf16.msra.mxu0 0
        %1567 = vmatpush.bf16.msra.mxu0 0
        %1568 = vmatpush.bf16.msra.mxu0 0
        %1569 = vmatpush.bf16.msra.mxu0 0
        %1570 = vmatpush.bf16.msra.mxu0 0
        %1571 = vmatpush.bf16.msra.mxu0 %v1562
        %1572 = vmatmul.bf16.gmra.mxu0 %v1559
        %v1573 = vpop.f32.mrf.mxu0
        %v1574 = vadd.f32 0.0, %v1573
        %v1575 = vpop.f32.mrf.mxu0
        %1576 = vdwg.mxu0
        %v1577 = vpack.c.bf16 %v1441, %v1441
        %v1578 = vpack.c.bf16 %v1460, %v1460
        %v1579 = vpack.c.bf16 %v1479, %v1479
        %v1580 = vpack.c.bf16 %v1498, %v1498
        %v1581 = vpack.c.bf16 %v1517, %v1517
        %v1582 = vpack.c.bf16 %v1536, %v1536
        %v1583 = vpack.c.bf16 %v1555, %v1555
        %v1584 = vpack.c.bf16 %v1574, %v1574
        %v1585 = vld [vmem:[%s759] sm:$0xf]
        %v1586 = vld [vmem:[%s759 + $0x4] sm:$0xf]
        %v1587 = vld [vmem:[%s759 + $0x8] sm:$0xf]
        %v1588 = vld [vmem:[%s759 + $0xc] sm:$0xf]
        %v1589 = vld [vmem:[%s759 + $0x10] sm:$0xf]
        %v1590 = vld [vmem:[%s759 + $0x14] sm:$0xf]
        %v1591 = vld [vmem:[%s759 + $0x18] sm:$0xf]
        %v1592 = vld [vmem:[%s759 + $0x1c] sm:$0xf]
        %v1595 = vunpack.c.l.b16 %v1577
        %v1596 = vunpack.c.l.b16 %v1578
        %v1597 = vpack.c.b16 %v1596, %v1595
        %v1600 = vunpack.c.l.b16 %v1585
        %v1601 = vunpack.c.l.b16 %v1586
        %v1602 = vpack.c.b16 %v1601, %v1600
        %v1605 = vsel %vm1015, %v1597, 0
        %1607 = vmatpush.bf16.msra.mxu0 0
        %1608 = vmatpush.bf16.msra.mxu0 0
        %1609 = vmatpush.bf16.msra.mxu0 0
        %1610 = vmatpush.bf16.msra.mxu0 0
        %1611 = vmatpush.bf16.msra.mxu0 0
        %1612 = vmatpush.bf16.msra.mxu0 0
        %1613 = vmatpush.bf16.msra.mxu0 0
        %1614 = vmatpush.bf16.msra.mxu0 %v1602
        %1615 = vmatmul.bf16.gmra.mxu0 %v1605
        %v1616 = vpop.f32.mrf.mxu0
        %v1617 = vadd.f32 0.0, %v1616
        %v1618 = vpop.f32.mrf.mxu0
        %v1619 = vadd.f32 0.0, %v1618
        %1620 = vdwg.mxu0
        %v1623 = vunpack.c.l.b16 %v1579
        %v1624 = vunpack.c.l.b16 %v1580
        %v1625 = vpack.c.b16 %v1624, %v1623
        %v1628 = vunpack.c.l.b16 %v1587
        %v1629 = vunpack.c.l.b16 %v1588
        %v1630 = vpack.c.b16 %v1629, %v1628
        %v1633 = vsel %vm1015, %v1625, 0
        %1635 = vmatpush.bf16.msra.mxu0 0
        %1636 = vmatpush.bf16.msra.mxu0 0
        %1637 = vmatpush.bf16.msra.mxu0 0
        %1638 = vmatpush.bf16.msra.mxu0 0
        %1639 = vmatpush.bf16.msra.mxu0 0
        %1640 = vmatpush.bf16.msra.mxu0 0
        %1641 = vmatpush.bf16.msra.mxu0 0
        %1642 = vmatpush.bf16.msra.mxu0 %v1630
        %1643 = vmatmul.bf16.gmra.mxu0 %v1633
        %v1644 = vpop.f32.mrf.mxu0
        %v1645 = vadd.f32 0.0, %v1644
        %v1646 = vpop.f32.mrf.mxu0
        %v1647 = vadd.f32 0.0, %v1646
        %1648 = vdwg.mxu0
        %v1651 = vunpack.c.l.b16 %v1581
        %v1652 = vunpack.c.l.b16 %v1582
        %v1653 = vpack.c.b16 %v1652, %v1651
        %v1656 = vunpack.c.l.b16 %v1589
        %v1657 = vunpack.c.l.b16 %v1590
        %v1658 = vpack.c.b16 %v1657, %v1656
        %v1661 = vsel %vm1015, %v1653, 0
        %1663 = vmatpush.bf16.msra.mxu0 0
        %1664 = vmatpush.bf16.msra.mxu0 0
        %1665 = vmatpush.bf16.msra.mxu0 0
        %1666 = vmatpush.bf16.msra.mxu0 0
        %1667 = vmatpush.bf16.msra.mxu0 0
        %1668 = vmatpush.bf16.msra.mxu0 0
        %1669 = vmatpush.bf16.msra.mxu0 0
        %1670 = vmatpush.bf16.msra.mxu0 %v1658
        %1671 = vmatmul.bf16.gmra.mxu0 %v1661
        %v1672 = vpop.f32.mrf.mxu0
        %v1673 = vadd.f32 0.0, %v1672
        %v1674 = vpop.f32.mrf.mxu0
        %v1675 = vadd.f32 0.0, %v1674
        %1676 = vdwg.mxu0
        %v1679 = vunpack.c.l.b16 %v1583
        %v1680 = vunpack.c.l.b16 %v1584
        %v1681 = vpack.c.b16 %v1680, %v1679
        %v1684 = vunpack.c.l.b16 %v1591
        %v1685 = vunpack.c.l.b16 %v1592
        %v1686 = vpack.c.b16 %v1685, %v1684
        %v1689 = vsel %vm1015, %v1681, 0
        %1691 = vmatpush.bf16.msra.mxu0 0
        %1692 = vmatpush.bf16.msra.mxu0 0
        %1693 = vmatpush.bf16.msra.mxu0 0
        %1694 = vmatpush.bf16.msra.mxu0 0
        %1695 = vmatpush.bf16.msra.mxu0 0
        %1696 = vmatpush.bf16.msra.mxu0 0
        %1697 = vmatpush.bf16.msra.mxu0 0
        %1698 = vmatpush.bf16.msra.mxu0 %v1686
        %1699 = vmatmul.bf16.gmra.mxu0 %v1689
        %v1700 = vpop.f32.mrf.mxu0
        %v1701 = vadd.f32 0.0, %v1700
        %v1702 = vpop.f32.mrf.mxu0
        %v1703 = vadd.f32 0.0, %v1702
        %1704 = vdwg.mxu0
        %v1705 = vsel %vm922, %v1617, 0.0
        %v1706 = vsel %vm922, %v1645, 0.0
        %v1707 = vadd.f32 %v1705, %v1706
        %v1708 = vsel %vm922, %v1673, 0.0
        %v1709 = vadd.f32 %v1707, %v1708
        %v1710 = vsel %vm922, %v1701, 0.0
        %v1711 = vadd.f32 %v1709, %v1710
        %v1712 = vsel %vm922, %v1619, 0.0
        %v1713 = vsel %vm922, %v1647, 0.0
        %v1714 = vadd.f32 %v1712, %v1713
        %v1715 = vsel %vm922, %v1675, 0.0
        %v1716 = vadd.f32 %v1714, %v1715
        %v1717 = vsel %vm922, %v1703, 0.0
        %v1718 = vadd.f32 %v1716, %v1717
        %v1719 = vld [vmem:[%s762] sm:$0x1]
        %v1721 = vperm.slane %v1719, 0
        %v1723 = vadd.f32 %v1711, %v1721
        %v1724 = vadd.f32 %v1718, %v1721
        %v1725 = vadd.f32 %v1723, %v865
        %v1726 = vadd.f32 %v1724, %v866
        %v1727 = vld [vmem:[%s765] sm:$0x1]
        %v1728 = vld [vmem:[%s768] sm:$0x1]
        %v1729 = vsel %vm922, %v1725, 0.0
        %1730 = vadd.xlane.f32.xlu0 %v1729
        %v1731 = vpop.xlane.xlu0 %1730
        %v1732 = vsel %vm922, %v1726, 0.0
        %1733 = vadd.xlane.f32.xlu0 %v1732
        %v1734 = vpop.xlane.xlu0 %1733
        %v1735 = vrcp.pop 64.0
        %v1736 = vmul.f32 64.0, %v1735
        %v1737 = vsub.f32 1.0, %v1736
        %v1738 = vmul.f32 %v1735, %v1737
        %v1739 = vadd.f32 %v1735, %v1738
        %vm1740 = vweird.f32 %v1735
        %v1741 = vsel %vm1740, %v1735, %v1739
        %v1742 = vmul.f32 %v1731, %v1741
        %v1743 = vmul.f32 %v1734, %v1741
        %v1744 = vsub.f32 %v1725, %v1742
        %v1745 = vsub.f32 %v1726, %v1743
        %v1746 = vmul.f32 %v1744, %v1744
        %v1747 = vmul.f32 %v1745, %v1745
        %v1748 = vsel %vm922, %v1746, 0.0
        %1749 = vadd.xlane.f32.xlu0 %v1748
        %v1750 = vpop.xlane.xlu0 %1749
        %v1751 = vsel %vm922, %v1747, 0.0
        %1752 = vadd.xlane.f32.xlu0 %v1751
        %v1753 = vpop.xlane.xlu0 %1752
        %v1754 = vmul.f32 %v1750, %v1741
        %v1755 = vmul.f32 %v1753, %v1741
        %v1756 = vadd.f32 %v1754, 1e-12
        %v1757 = vadd.f32 %v1755, 1e-12
        %v1758 = vrsqrt.pop %v1756
        %v1759 = vmul.f32 %v1758, %v1756
        %v1760 = vmul.f32 %v1759, %v1758
        %v1761 = vmul.f32 0.5, %v1760
        %v1762 = vsub.f32 1.5, %v1761
        %v1763 = vmul.f32 %v1758, %v1762
        %vm1764 = vweird.f32 %v1756
        %vm1765 = vweird.f32 %v1758
        %vm1766 = vmor %vm1764, %vm1765
        %v1767 = vsel %vm1766, %v1758, %v1763
        %v1768 = vrsqrt.pop %v1757
        %v1769 = vmul.f32 %v1768, %v1757
        %v1770 = vmul.f32 %v1769, %v1768
        %v1771 = vmul.f32 0.5, %v1770
        %v1772 = vsub.f32 1.5, %v1771
        %v1773 = vmul.f32 %v1768, %v1772
        %vm1774 = vweird.f32 %v1757
        %vm1775 = vweird.f32 %v1768
        %vm1776 = vmor %vm1774, %vm1775
        %v1777 = vsel %vm1776, %v1768, %v1773
        %v1778 = vmul.f32 %v1744, %v1767
        %v1779 = vmul.f32 %v1745, %v1777
        %v1781 = vperm.slane %v1727, 0
        %v1783 = vmul.f32 %v1778, %v1781
        %v1784 = vmul.f32 %v1779, %v1781
        %v1786 = vperm.slane %v1728, 0
        %v1788 = vadd.f32 %v1783, %v1786
        %v1789 = vadd.f32 %v1784, %v1786
        %v1790 = vld [vmem:[%s776] sm:$0x1]
        %v1791 = vpack.c.bf16 %v1789, %v1788
        %v1792 = vld [vmem:[%s773] sm:$0xf]
        %v1793 = vld [vmem:[%s773 + $0x4] sm:$0xf]
        %v1794 = vld [vmem:[%s773 + $0x8] sm:$0xf]
        %v1795 = vld [vmem:[%s773 + $0xc] sm:$0xf]
        %v1796 = vld [vmem:[%s773 + $0x10] sm:$0xf]
        %v1797 = vld [vmem:[%s773 + $0x14] sm:$0xf]
        %v1798 = vld [vmem:[%s773 + $0x18] sm:$0xf]
        %v1799 = vld [vmem:[%s773 + $0x1c] sm:$0xf]
        %v1801 = vperm.slane %v1790, 0
        %v1811 = vunpack.c.l.b16 %v1792
        %v1812 = vunpack.c.l.b16 %v1793
        %v1813 = vunpack.c.l.b16 %v1794
        %v1814 = vunpack.c.l.b16 %v1795
        %v1815 = vunpack.c.l.b16 %v1796
        %v1816 = vunpack.c.l.b16 %v1797
        %v1817 = vunpack.c.l.b16 %v1798
        %v1818 = vunpack.c.l.b16 %v1799
        %v1819 = vpack.c.b16 %v1812, %v1811
        %v1820 = vpack.c.b16 %v1814, %v1813
        %v1821 = vpack.c.b16 %v1816, %v1815
        %v1822 = vpack.c.b16 %v1818, %v1817
        %v1828 = vsel %vm922, %v1791, 0
        %1830 = vmatpush.bf16.msra.mxu0 0
        %1831 = vmatpush.bf16.msra.mxu0 0
        %1832 = vmatpush.bf16.msra.mxu0 0
        %1833 = vmatpush.bf16.msra.mxu0 0
        %1834 = vmatpush.bf16.msra.mxu0 %v1822
        %1835 = vmatpush.bf16.msra.mxu0 %v1821
        %1836 = vmatpush.bf16.msra.mxu0 %v1820
        %1837 = vmatpush.bf16.msra.mxu0 %v1819
        %1838 = vmatmul.bf16.gmra.mxu0 %v1828
        %v1839 = vpop.f32.mrf.mxu0
        %v1840 = vadd.f32 %v1801, %v1839
        %v1841 = vpop.f32.mrf.mxu0
        %v1842 = vadd.f32 %v1801, %v1841
        %1843 = vdwg.mxu0
        %v1844 = vmul.f32 %v1840, 0.5
        %v1845 = vmul.f32 %v1842, 0.5
        %v1846 = vmul.f32 %v1840, 0.044715
        %v1847 = vmul.f32 %v1842, 0.044715
        %v1848 = vmul.f32 %v1846, %v1840
        %v1849 = vmul.f32 %v1847, %v1842
        %v1850 = vmul.f32 %v1848, %v1840
        %v1851 = vmul.f32 %v1849, %v1842
        %v1852 = vadd.f32 %v1840, %v1850
        %v1853 = vadd.f32 %v1842, %v1851
        %v1854 = vmul.f32 %v1852, 0.7978846
        %v1855 = vmul.f32 %v1853, 0.7978846
        %v1856 = vtanh.pop %v1854
        %v1857 = vtanh.pop %v1855
        %v1858 = vadd.f32 %v1856, 1.0
        %v1859 = vadd.f32 %v1857, 1.0
        %v1860 = vmul.f32 %v1844, %v1858
        %v1861 = vmul.f32 %v1845, %v1859
        %v1862 = vld [vmem:[%s784] sm:$0x1]
        %v1863 = vpack.c.bf16 %v1861, %v1860
        %v1864 = vld [vmem:[%s781] sm:$0xf]
        %v1865 = vld [vmem:[%s781 + $0x4] sm:$0xf]
        %v1866 = vld [vmem:[%s781 + $0x8] sm:$0xf]
        %v1867 = vld [vmem:[%s781 + $0xc] sm:$0xf]
        %v1868 = vld [vmem:[%s781 + $0x10] sm:$0xf]
        %v1869 = vld [vmem:[%s781 + $0x14] sm:$0xf]
        %v1870 = vld [vmem:[%s781 + $0x18] sm:$0xf]
        %v1871 = vld [vmem:[%s781 + $0x1c] sm:$0xf]
        %v1872 = vld [vmem:[%s781 + $0x20] sm:$0xf]
        %v1873 = vld [vmem:[%s781 + $0x24] sm:$0xf]
        %v1874 = vld [vmem:[%s781 + $0x28] sm:$0xf]
        %v1875 = vld [vmem:[%s781 + $0x2c] sm:$0xf]
        %v1876 = vld [vmem:[%s781 + $0x30] sm:$0xf]
        %v1877 = vld [vmem:[%s781 + $0x34] sm:$0xf]
        %v1878 = vld [vmem:[%s781 + $0x38] sm:$0xf]
        %v1879 = vld [vmem:[%s781 + $0x3c] sm:$0xf]
        %v1881 = vperm.slane %v1862, 0
        %v1899 = vunpack.c.l.b16 %v1864
        %v1900 = vunpack.c.l.b16 %v1865
        %v1901 = vunpack.c.l.b16 %v1866
        %v1902 = vunpack.c.l.b16 %v1867
        %v1903 = vunpack.c.l.b16 %v1868
        %v1904 = vunpack.c.l.b16 %v1869
        %v1905 = vunpack.c.l.b16 %v1870
        %v1906 = vunpack.c.l.b16 %v1871
        %v1907 = vunpack.c.l.b16 %v1872
        %v1908 = vunpack.c.l.b16 %v1873
        %v1909 = vunpack.c.l.b16 %v1874
        %v1910 = vunpack.c.l.b16 %v1875
        %v1911 = vunpack.c.l.b16 %v1876
        %v1912 = vunpack.c.l.b16 %v1877
        %v1913 = vunpack.c.l.b16 %v1878
        %v1914 = vunpack.c.l.b16 %v1879
        %v1915 = vpack.c.b16 %v1900, %v1899
        %v1916 = vpack.c.b16 %v1902, %v1901
        %v1917 = vpack.c.b16 %v1904, %v1903
        %v1918 = vpack.c.b16 %v1906, %v1905
        %v1919 = vpack.c.b16 %v1908, %v1907
        %v1920 = vpack.c.b16 %v1910, %v1909
        %v1921 = vpack.c.b16 %v1912, %v1911
        %v1922 = vpack.c.b16 %v1914, %v1913
        %1931 = vmatpush.bf16.msra.mxu0 %v1922
        %1932 = vmatpush.bf16.msra.mxu0 %v1921
        %1933 = vmatpush.bf16.msra.mxu0 %v1920
        %1934 = vmatpush.bf16.msra.mxu0 %v1919
        %1935 = vmatpush.bf16.msra.mxu0 %v1918
        %1936 = vmatpush.bf16.msra.mxu0 %v1917
        %1937 = vmatpush.bf16.msra.mxu0 %v1916
        %1938 = vmatpush.bf16.msra.mxu0 %v1915
        %1939 = vmatmul.bf16.gmra.mxu0 %v1863
        %v1940 = vpop.f32.mrf.mxu0
        %v1941 = vadd.f32 %v1881, %v1940
        %v1942 = vpop.f32.mrf.mxu0
        %v1943 = vadd.f32 %v1881, %v1942
        %1944 = vdwg.mxu0
        %v1945 = vadd.f32 %v1941, %v1788
        %v1946 = vadd.f32 %v1943, %v1789
        %v1947 = vld [vmem:[%s787] sm:$0x1]
        %v1948 = vld [vmem:[%s790] sm:$0x1]
        %v1949 = vsel %vm922, %v1945, 0.0
        %1950 = vadd.xlane.f32.xlu0 %v1949
        %v1951 = vpop.xlane.xlu0 %1950
        %v1952 = vsel %vm922, %v1946, 0.0
        %1953 = vadd.xlane.f32.xlu0 %v1952
        %v1954 = vpop.xlane.xlu0 %1953
        %v1955 = vmul.f32 %v1951, %v1741
        %v1956 = vmul.f32 %v1954, %v1741
        %v1957 = vsub.f32 %v1945, %v1955
        %v1958 = vsub.f32 %v1946, %v1956
        %v1959 = vmul.f32 %v1957, %v1957
        %v1960 = vmul.f32 %v1958, %v1958
        %v1961 = vsel %vm922, %v1959, 0.0
        %1962 = vadd.xlane.f32.xlu0 %v1961
        %v1963 = vpop.xlane.xlu0 %1962
        %v1964 = vsel %vm922, %v1960, 0.0
        %1965 = vadd.xlane.f32.xlu0 %v1964
        %v1966 = vpop.xlane.xlu0 %1965
        %v1967 = vmul.f32 %v1963, %v1741
        %v1968 = vmul.f32 %v1966, %v1741
        %v1969 = vadd.f32 %v1967, 1e-12
        %v1970 = vadd.f32 %v1968, 1e-12
        %v1971 = vrsqrt.pop %v1969
        %v1972 = vmul.f32 %v1971, %v1969
        %v1973 = vmul.f32 %v1972, %v1971
        %v1974 = vmul.f32 0.5, %v1973
        %v1975 = vsub.f32 1.5, %v1974
        %v1976 = vmul.f32 %v1971, %v1975
        %vm1977 = vweird.f32 %v1969
        %vm1978 = vweird.f32 %v1971
        %vm1979 = vmor %vm1977, %vm1978
        %v1980 = vsel %vm1979, %v1971, %v1976
        %v1981 = vrsqrt.pop %v1970
        %v1982 = vmul.f32 %v1981, %v1970
        %v1983 = vmul.f32 %v1982, %v1981
        %v1984 = vmul.f32 0.5, %v1983
        %v1985 = vsub.f32 1.5, %v1984
        %v1986 = vmul.f32 %v1981, %v1985
        %vm1987 = vweird.f32 %v1970
        %vm1988 = vweird.f32 %v1981
        %vm1989 = vmor %vm1987, %vm1988
        %v1990 = vsel %vm1989, %v1981, %v1986
        %v1991 = vmul.f32 %v1957, %v1980
        %v1992 = vmul.f32 %v1958, %v1990
        %v1994 = vperm.slane %v1947, 0
        %v1996 = vmul.f32 %v1991, %v1994
        %v1997 = vmul.f32 %v1992, %v1994
        %v1999 = vperm.slane %v1948, 0
        %v2001 = vadd.f32 %v1996, %v1999
        %v2002 = vadd.f32 %v1997, %v1999
        %2003 = vst.msk [vmem:[#allocation2] sm:$0xff] %vm922, %v2001
        %2004 = vst.msk [vmem:[#allocation2 + $0x8] sm:$0xff] %vm922, %v2002
        %p2005 = scmp.eq.s32.totalorder %s32, 1
        // Predicated region
        $region105: #{distilbert_class_forward.1} parent=99 // pred_check
          %p2006 = pneg %p2005
        $region106: #{distilbert_class_forward.1} parent=99 // pred_check_branch
          %2008 = sbr.rel (%p2006) target = $region108
        $region107: #{distilbert_class_forward.1} parent=99 // pred_region
          %v2009 = vld [vmem:[%s17] sm:$0x1]
          %v2010 = vpack.c.bf16 %v2001, %v2001
          %v2011 = vpack.c.bf16 %v2002, %v2002
          %v2012 = vld [vmem:[%s16] sm:$0xf]
          %v2013 = vld [vmem:[%s16 + $0x4] sm:$0xf]
          %v2014 = vld [vmem:[%s16 + $0x8] sm:$0xf]
          %v2015 = vld [vmem:[%s16 + $0xc] sm:$0xf]
          %v2016 = vld [vmem:[%s16 + $0x10] sm:$0xf]
          %v2017 = vld [vmem:[%s16 + $0x14] sm:$0xf]
          %v2018 = vld [vmem:[%s16 + $0x18] sm:$0xf]
          %v2019 = vld [vmem:[%s16 + $0x1c] sm:$0xf]
          %v2021 = vperm.slane %v2009, 0
          %v2025 = vunpack.c.l.b16 %v2010
          %v2026 = vunpack.c.l.b16 %v2011
          %v2027 = vrot.slane %v2026, 7
          %vm2028 = vcmask 1041409
          %v2029 = vsel %vm2028, %v2027, %v2025
          %v2030 = vpack.c.b16 %v2029, %v2029
          %v2039 = vunpack.c.l.b16 %v2012
          %v2040 = vunpack.c.l.b16 %v2013
          %v2041 = vunpack.c.l.b16 %v2014
          %v2042 = vunpack.c.l.b16 %v2015
          %v2043 = vunpack.c.l.b16 %v2016
          %v2044 = vunpack.c.l.b16 %v2017
          %v2045 = vunpack.c.l.b16 %v2018
          %v2046 = vunpack.c.l.b16 %v2019
          %v2047 = vpack.c.b16 %v2040, %v2039
          %v2048 = vpack.c.b16 %v2042, %v2041
          %v2049 = vpack.c.b16 %v2044, %v2043
          %v2050 = vpack.c.b16 %v2046, %v2045
          %v2056 = vsel %vm922, %v2030, 0
          %2058 = vmatpush.bf16.msra.mxu0 0
          %2059 = vmatpush.bf16.msra.mxu0 0
          %2060 = vmatpush.bf16.msra.mxu0 0
          %2061 = vmatpush.bf16.msra.mxu0 0
          %2062 = vmatpush.bf16.msra.mxu0 %v2050
          %2063 = vmatpush.bf16.msra.mxu0 %v2049
          %2064 = vmatpush.bf16.msra.mxu0 %v2048
          %2065 = vmatpush.bf16.msra.mxu0 %v2047
          %2066 = vmatmul.bf16.gmra.mxu0 %v2056
          %v2067 = vpop.f32.mrf.mxu0
          %v2068 = vadd.f32 %v2021, %v2067
          %v2069 = vpop.f32.mrf.mxu0
          %2070 = vdwg.mxu0
          %v2071 = vmax.f32 %v2068, 0.0
          %v2072 = vld [vmem:[%s19] sm:$0x1]
          %v2073 = vpack.c.bf16 %v2071, %v2071
          %v2074 = vld [vmem:[%s18] sm:$0xf]
          %v2075 = vld [vmem:[%s18 + $0x4] sm:$0xf]
          %v2076 = vld [vmem:[%s18 + $0x8] sm:$0xf]
          %v2077 = vld [vmem:[%s18 + $0xc] sm:$0xf]
          %v2078 = vld [vmem:[%s18 + $0x10] sm:$0xf]
          %v2079 = vld [vmem:[%s18 + $0x14] sm:$0xf]
          %v2080 = vld [vmem:[%s18 + $0x18] sm:$0xf]
          %v2081 = vld [vmem:[%s18 + $0x1c] sm:$0xf]
          %v2083 = vperm.slane %v2072, 0
          %v2093 = vunpack.c.l.b16 %v2074
          %v2094 = vunpack.c.l.b16 %v2075
          %v2095 = vunpack.c.l.b16 %v2076
          %v2096 = vunpack.c.l.b16 %v2077
          %v2097 = vunpack.c.l.b16 %v2078
          %v2098 = vunpack.c.l.b16 %v2079
          %v2099 = vunpack.c.l.b16 %v2080
          %v2100 = vunpack.c.l.b16 %v2081
          %v2101 = vpack.c.b16 %v2094, %v2093
          %v2102 = vpack.c.b16 %v2096, %v2095
          %v2103 = vpack.c.b16 %v2098, %v2097
          %v2104 = vpack.c.b16 %v2100, %v2099
          %v2110 = vsel %vm922, %v2073, 0
          %2112 = vmatpush.bf16.msra.mxu0 0
          %2113 = vmatpush.bf16.msra.mxu0 0
          %2114 = vmatpush.bf16.msra.mxu0 0
          %2115 = vmatpush.bf16.msra.mxu0 0
          %2116 = vmatpush.bf16.msra.mxu0 %v2104
          %2117 = vmatpush.bf16.msra.mxu0 %v2103
          %2118 = vmatpush.bf16.msra.mxu0 %v2102
          %2119 = vmatpush.bf16.msra.mxu0 %v2101
          %2120 = vmatmul.bf16.gmra.mxu0 %v2110
          %v2121 = vpop.f32.mrf.mxu0
          %v2122 = vadd.f32 %v2083, %v2121
          %v2123 = vpop.f32.mrf.mxu0
          %2124 = vdwg.mxu0
          %2125 = vst [vmem:[#allocation3] sm:$0x3] %v2122
        $region108: #{distilbert_class_forward.1} parent=99 // pred_fallthru
          _
        // Predicated region
        $region109: #{distilbert_class_forward.1} parent=99 // pred_check
          %p2126 = pneg %p525
        $region110: #{distilbert_class_forward.1} parent=99 // pred_check_branch
          %2128 = sbr.rel (%p2126) target = $region112
        $region111: #{distilbert_class_forward.1} parent=99 // pred_region
          %2130 = vsyncadd [#allocation4], 0
          %s2132 = sshll.u32 [#allocation3], 4
          %s2133 = int_to_ptr.vmem [resolvable:$true] %s2132
          %s2134 = sshll.u32 %s20, 4
          %s2135 = int_to_ptr.hbm [resolvable:$true] %s2134
          %2137 = dma.vmem_to_hbm [thread:$0]  %s2133, 32, %s2135, [#allocation4]
        $region112: #{distilbert_class_forward.1} parent=99 // pred_fallthru
          _
        // Predicated region
        $region113: #{distilbert_class_forward.1} parent=99 // pred_check
          %p2138 = pneg %p525
        $region114: #{distilbert_class_forward.1} parent=99 // pred_check_branch
          %2140 = sbr.rel (%p2138) target = $region116
        $region115: #{distilbert_class_forward.1} parent=99 // pred_region
          %2142 = dma.done [#allocation4], 32
        $region116: #{distilbert_class_forward.1} parent=99 // pred_fallthru
          _
      $region100: #{distilbert_class_forward.1} parent=5 // pred_fallthru
        _
      %p2143 = scmp.le.s32.totalorder 2, %s27
      // Predicated region
      $region117: #{distilbert_class_forward.1} parent=5 // pred_check
        %p2144 = pneg %p2143
      $region118: #{distilbert_class_forward.1} parent=5 // pred_check_branch
        %2146 = sbr.rel (%p2144) target = $region120
      $region119: #{distilbert_class_forward.1} parent=5 // pred_region
        %s2147 = ssub.s32 %s27, 2
      $region120: #{distilbert_class_forward.1} parent=5 // pred_fallthru
        _
    $region6: #{distilbert_class_forward.1} parent=1 // loop_footer
      %s31 = sadd.s32 1, %s27
    $region7: #{distilbert_class_forward.1} parent=1 // loop_footer_branch
      %26 = sbr.rel target = $region3
    $region8: #{distilbert_class_forward.1} parent=1 // loop_exit
      _
    %2148 = vsyncpa [#allocation4], 1
    %s2149 = scalar_lea.sflag [#allocation4], 1
    %2150 = vsyncpa %s2149, 1

</llo_original>
